<compile_context>
chip_gen: v5e
topology: v5e:2x2
jax: 0.10.0
libtpu: 0.0.40
codegen_flags: <defaults>
</compile_context>

<pallas_src>
import functools

import jax
import jax.numpy as jnp
from jax.experimental import pallas as pl
from jax.experimental.pallas import tpu as pltpu

LANE = 128    # TPU lane width; all channel dims zero-padded to this
GROUP = 32    # rows per (batch, pool-window) group in the conv1 patch matrix
C1, C2, NOUT = 24, 48, 10


# ----------------------------------------------------------------------------
# Single fused kernel: conv1 -> maxpool -> tanh -> conv2 -> tanh -> fc1 -> tanh
# ----------------------------------------------------------------------------
def _classifier_kernel(p1_ref, w1_ref, b1_ref, w2_ref, b2_ref, wf_ref, bf_ref,
                       o_ref, *, batch):
    # conv1 as one matmul over im2col patches.
    # p1: (batch*4*GROUP, 25), rows ordered (b, di, dj | oi*5+oj) with 7 zero
    # pad rows per group; w1: (25, 128).  h1[row, c] = pre-pool conv1 output.
    h1 = jnp.dot(p1_ref[...], w1_ref[...],
                 preferred_element_type=jnp.float32) + b1_ref[...]

    # 2x2 / stride-2 maxpool + tanh: the four pool shifts (di, dj) are the four
    # consecutive 32-row groups of each batch -> tile-aligned slices + max.
    pooled = []
    for b in range(batch):
        base = b * 4 * GROUP
        wins = [h1[base + w * GROUP: base + w * GROUP + 25, :] for w in range(4)]
        pooled.append(jnp.tanh(jnp.maximum(jnp.maximum(wins[0], wins[1]),
                                           jnp.maximum(wins[2], wins[3]))))
        # pooled[b]: (25, 128), rows = oi*5 + oj, lanes = channel (24 real)

    # conv2 (3x3, 24->48) as 9 channel-contraction matmuls over shifted rows.
    acc2 = jnp.zeros((batch * 9, LANE), jnp.float32)        # rows = (b, i, j)
    for kpos in range(9):
        ki, kj = kpos // 3, kpos % 3
        lhs = jnp.concatenate(
            [pooled[b][(i + ki) * 5 + kj:(i + ki) * 5 + kj + 3, :]
             for b in range(batch) for i in range(3)],
            axis=0)                                         # (batch*9, 128)
        acc2 = acc2 + jnp.dot(lhs, w2_ref[kpos],
                              preferred_element_type=jnp.float32)
    out2 = jnp.tanh(acc2 + b2_ref[...])                     # (batch*9, 128)

    # Flatten (PyTorch channel-major order is folded into wf at init) + fc1.
    flat = jnp.concatenate(
        [jnp.concatenate([out2[b * 9 + r:b * 9 + r + 1, :] for r in range(9)],
                         axis=1)                            # (1, 9*128)
         for b in range(batch)],
        axis=0)                                             # (batch, 1152)
    res = jnp.dot(flat, wf_ref[...],
                  preferred_element_type=jnp.float32) + bf_ref[...]
    o_ref[...] = jnp.tanh(res)[:, :NOUT]


# ----------------------------------------------------------------------------
# Host-side prep: conv1 im2col in pool-window-major order (tiny gather on x)
# ----------------------------------------------------------------------------
def _conv1_patches(x_img):
    """x_img (B, 14, 14) -> (B*4*GROUP, 25) patches, rows (b, di, dj, oi*5+oj)."""
    B = x_img.shape[0]
    sl = [x_img[:, ki:ki + 10, kj:kj + 10] for ki in range(5) for kj in range(5)]
    pat = jnp.stack(sl, axis=-1)                  # (B, 10, 10, 25)  (b, i, j, k)
    pat = pat.reshape(B, 5, 2, 5, 2, 25)          # (b, oi, di, oj, dj, k)
    pat = pat.transpose(0, 2, 4, 1, 3, 5)         # (b, di, dj, oi, oj, k)
    pat = pat.reshape(B, 4, 25, 25)
    pat = jnp.pad(pat, ((0, 0), (0, 0), (0, GROUP - 25), (0, 0)))
    return pat.reshape(B * 4 * GROUP, 25)


def classifier_forward(prep, x_nchw):
    B = x_nchw.shape[0]
    x_img = x_nchw[:, 0].astype(jnp.float32)      # (B, 14, 14), single channel
    p1 = _conv1_patches(x_img)
    kernel = functools.partial(_classifier_kernel, batch=B)
    return pl.pallas_call(
        kernel,
        out_shape=jax.ShapeDtypeStruct((B, NOUT), jnp.float32),
        in_specs=[pl.BlockSpec(memory_space=pltpu.MemorySpace.VMEM)] * 7,
        out_specs=pl.BlockSpec(memory_space=pltpu.MemorySpace.VMEM),
    )(p1, prep["w1"], prep["b1"], prep["w2"], prep["b2"], prep["wf"], prep["bf"])


# ----------------------------------------------------------------------------
# Parameters: PyTorch-layout init + one-time repack into lane-padded layouts
# ----------------------------------------------------------------------------
def init_params(key):
    ks = jax.random.split(key, 6)

    def uni(k, shape, fan_in):
        bound = 1.0 / jnp.sqrt(float(fan_in))
        return jax.random.uniform(k, shape, jnp.float32, -bound, bound)

    return {
        "conv1_w": uni(ks[0], (C1, 1, 5, 5), 1 * 5 * 5),
        "conv1_b": uni(ks[1], (C1,), 1 * 5 * 5),
        "conv2_w": uni(ks[2], (C2, C1, 3, 3), C1 * 3 * 3),
        "conv2_b": uni(ks[3], (C2,), C1 * 3 * 3),
        "fc1_w": uni(ks[4], (NOUT, C2 * 3 * 3), C2 * 3 * 3),
        "fc1_b": uni(ks[5], (NOUT,), C2 * 3 * 3),
    }


def prepare_params(p):
    """One-time repack: lane-pad channels to 128, fold flatten order into wf."""
    w1 = jnp.transpose(p["conv1_w"][:, 0], (1, 2, 0)).reshape(25, C1)
    w1 = jnp.pad(w1, ((0, 0), (0, LANE - C1)))                       # (25, 128)
    b1 = jnp.pad(p["conv1_b"], (0, LANE - C1)).reshape(1, LANE)

    w2 = jnp.transpose(p["conv2_w"], (2, 3, 1, 0)).reshape(9, C1, C2)
    w2 = jnp.pad(w2, ((0, 0), (0, LANE - C1), (0, LANE - C2)))       # (9,128,128)
    b2 = jnp.pad(p["conv2_b"], (0, LANE - C2)).reshape(1, LANE)

    # fc1.weight is (10, 432) over k = c*9 + (i*3+j); our flat is (r*128 + c).
    wf = p["fc1_w"].T.reshape(C2, 9, NOUT).transpose(1, 0, 2)        # (r, c, o)
    wf = jnp.pad(wf, ((0, 0), (0, LANE - C2), (0, LANE - NOUT)))
    wf = wf.reshape(9 * LANE, LANE)                                  # (1152,128)
    bf = jnp.pad(p["fc1_b"], (0, LANE - NOUT)).reshape(1, LANE)
    return {"w1": w1, "b1": b1, "w2": w2, "b2": b2, "wf": wf, "bf": bf}


# ----------------------------------------------------------------------------
# Pure-JAX reference (matches PyTorch semantics) for validation
# ----------------------------------------------------------------------------
def reference_forward(p, x):
    dn = ("NCHW", "OIHW", "NCHW")
    hi = jax.lax.Precision.HIGHEST
    y = jax.lax.conv_general_dilated(x, p["conv1_w"], (1, 1), "VALID",
                                     dimension_numbers=dn, precision=hi)
    y = y + p["conv1_b"][None, :, None, None]
    y = jax.lax.reduce_window(y, -jnp.inf, jax.lax.max,
                              (1, 1, 2, 2), (1, 1, 2, 2), "VALID")
    y = jnp.tanh(y)
    y = jax.lax.conv_general_dilated(y, p["conv2_w"], (1, 1), "VALID",
                                     dimension_numbers=dn, precision=hi)
    y = jnp.tanh(y + p["conv2_b"][None, :, None, None])
    flat = y.reshape(y.shape[0], -1)
    return jnp.tanh(jnp.dot(flat, p["fc1_w"].T, precision=hi) + p["fc1_b"])


# ----------------------------------------------------------------------------
if __name__ == "__main__":
    key = jax.random.PRNGKey(0)
    k_param, k_x = jax.random.split(key)

    params = init_params(k_param)
    prep = prepare_params(params)
    # PyTorch-convention NCHW input: (B=2, C=1, H=14, W=14)
    x = jax.random.normal(k_x, (2, 1, 14, 14), dtype=jnp.float32)

    out = jax.jit(classifier_forward)(prep, x)
    out = jax.block_until_ready(out)
    assert out.shape == (2, NOUT), out.shape

    ref = jax.jit(reference_forward)(params, x)
    ref = jax.block_until_ready(ref)
    assert float(jnp.max(jnp.abs(out - ref))) < 1e-2, "mismatch vs reference"

    print("KERNEL_OK")
</pallas_src>

<mosaic_0001>
module attributes {stable_mosaic.version = 11 : i64} {
  func.func @_classifier_kernel(%arg0: memref<256x25xf32, #tpu.memory_space<vmem>>, %arg1: memref<25x128xf32, #tpu.memory_space<vmem>>, %arg2: memref<1x128xf32, #tpu.memory_space<vmem>>, %arg3: memref<9x128x128xf32, #tpu.memory_space<vmem>>, %arg4: memref<1x128xf32, #tpu.memory_space<vmem>>, %arg5: memref<1152x128xf32, #tpu.memory_space<vmem>>, %arg6: memref<1x128xf32, #tpu.memory_space<vmem>>, %arg7: memref<2x10xf32, #tpu.memory_space<vmem>>) attributes {dimension_semantics = [], scalar_prefetch = 0 : i64, scratch_operands = 0 : i64, tpu.core_type = #tpu.core_type<tc>} {
    %c0 = arith.constant 0 : index
    %c0_0 = arith.constant 0 : index
    %0 = vector.load %arg0[%c0, %c0_0] : memref<256x25xf32, #tpu.memory_space<vmem>>, vector<256x25xf32>
    %c0_1 = arith.constant 0 : index
    %c0_2 = arith.constant 0 : index
    %1 = vector.load %arg1[%c0_1, %c0_2] : memref<25x128xf32, #tpu.memory_space<vmem>>, vector<25x128xf32>
    %cst = arith.constant dense<0.000000e+00> : vector<256x128xf32>
    %2 = tpu.matmul %0, %1, %cst {dimension_numbers = #tpu.dot_dimension_numbers<[1], [0], [0], [1], [0, 0, 1, 1], [], []>} : vector<256x25xf32>, vector<25x128xf32>, vector<256x128xf32> -> vector<256x128xf32>
    %c0_3 = arith.constant 0 : index
    %c0_4 = arith.constant 0 : index
    %3 = vector.load %arg2[%c0_3, %c0_4] : memref<1x128xf32, #tpu.memory_space<vmem>>, vector<1x128xf32>
    %4 = vector.broadcast %3 : vector<1x128xf32> to vector<256x128xf32>
    %5 = arith.addf %2, %4 : vector<256x128xf32>
    %6 = vector.extract_strided_slice %5 {offsets = [0, 0], sizes = [25, 128], strides = [1, 1]} : vector<256x128xf32> to vector<25x128xf32>
    %7 = vector.extract_strided_slice %5 {offsets = [32, 0], sizes = [25, 128], strides = [1, 1]} : vector<256x128xf32> to vector<25x128xf32>
    %8 = vector.extract_strided_slice %5 {offsets = [64, 0], sizes = [25, 128], strides = [1, 1]} : vector<256x128xf32> to vector<25x128xf32>
    %9 = vector.extract_strided_slice %5 {offsets = [96, 0], sizes = [25, 128], strides = [1, 1]} : vector<256x128xf32> to vector<25x128xf32>
    %10 = arith.maximumf %6, %7 : vector<25x128xf32>
    %11 = arith.maximumf %8, %9 : vector<25x128xf32>
    %12 = arith.maximumf %10, %11 : vector<25x128xf32>
    %13 = math.tanh %12 : vector<25x128xf32>
    %14 = vector.extract_strided_slice %5 {offsets = [128, 0], sizes = [25, 128], strides = [1, 1]} : vector<256x128xf32> to vector<25x128xf32>
    %15 = vector.extract_strided_slice %5 {offsets = [160, 0], sizes = [25, 128], strides = [1, 1]} : vector<256x128xf32> to vector<25x128xf32>
    %16 = vector.extract_strided_slice %5 {offsets = [192, 0], sizes = [25, 128], strides = [1, 1]} : vector<256x128xf32> to vector<25x128xf32>
    %17 = vector.extract_strided_slice %5 {offsets = [224, 0], sizes = [25, 128], strides = [1, 1]} : vector<256x128xf32> to vector<25x128xf32>
    %18 = arith.maximumf %14, %15 : vector<25x128xf32>
    %19 = arith.maximumf %16, %17 : vector<25x128xf32>
    %20 = arith.maximumf %18, %19 : vector<25x128xf32>
    %21 = math.tanh %20 : vector<25x128xf32>
    %cst_5 = arith.constant 0.000000e+00 : f32
    %22 = vector.broadcast %cst_5 : f32 to vector<18x128xf32>
    %23 = vector.extract_strided_slice %13 {offsets = [0, 0], sizes = [3, 128], strides = [1, 1]} : vector<25x128xf32> to vector<3x128xf32>
    %24 = vector.extract_strided_slice %13 {offsets = [5, 0], sizes = [3, 128], strides = [1, 1]} : vector<25x128xf32> to vector<3x128xf32>
    %25 = vector.extract_strided_slice %13 {offsets = [10, 0], sizes = [3, 128], strides = [1, 1]} : vector<25x128xf32> to vector<3x128xf32>
    %26 = vector.extract_strided_slice %21 {offsets = [0, 0], sizes = [3, 128], strides = [1, 1]} : vector<25x128xf32> to vector<3x128xf32>
    %27 = vector.extract_strided_slice %21 {offsets = [5, 0], sizes = [3, 128], strides = [1, 1]} : vector<25x128xf32> to vector<3x128xf32>
    %28 = vector.extract_strided_slice %21 {offsets = [10, 0], sizes = [3, 128], strides = [1, 1]} : vector<25x128xf32> to vector<3x128xf32>
    %29 = tpu.concatenate %23, %24, %25, %26, %27, %28 in 0 : vector<3x128xf32>, vector<3x128xf32>, vector<3x128xf32>, vector<3x128xf32>, vector<3x128xf32>, vector<3x128xf32> -> vector<18x128xf32>
    %c0_6 = arith.constant 0 : index
    %c0_7 = arith.constant 0 : index
    %c0_8 = arith.constant 0 : index
    %30 = vector.load %arg3[%c0_6, %c0_7, %c0_8] : memref<9x128x128xf32, #tpu.memory_space<vmem>>, vector<1x128x128xf32>
    %31 = vector.shape_cast %30 : vector<1x128x128xf32> to vector<128x128xf32>
    %cst_9 = arith.constant dense<0.000000e+00> : vector<18x128xf32>
    %32 = tpu.matmul %29, %31, %cst_9 {dimension_numbers = #tpu.dot_dimension_numbers<[1], [0], [0], [1], [0, 0, 1, 1], [], []>} : vector<18x128xf32>, vector<128x128xf32>, vector<18x128xf32> -> vector<18x128xf32>
    %33 = arith.addf %22, %32 : vector<18x128xf32>
    %34 = vector.extract_strided_slice %13 {offsets = [1, 0], sizes = [3, 128], strides = [1, 1]} : vector<25x128xf32> to vector<3x128xf32>
    %35 = vector.extract_strided_slice %13 {offsets = [6, 0], sizes = [3, 128], strides = [1, 1]} : vector<25x128xf32> to vector<3x128xf32>
    %36 = vector.extract_strided_slice %13 {offsets = [11, 0], sizes = [3, 128], strides = [1, 1]} : vector<25x128xf32> to vector<3x128xf32>
    %37 = vector.extract_strided_slice %21 {offsets = [1, 0], sizes = [3, 128], strides = [1, 1]} : vector<25x128xf32> to vector<3x128xf32>
    %38 = vector.extract_strided_slice %21 {offsets = [6, 0], sizes = [3, 128], strides = [1, 1]} : vector<25x128xf32> to vector<3x128xf32>
    %39 = vector.extract_strided_slice %21 {offsets = [11, 0], sizes = [3, 128], strides = [1, 1]} : vector<25x128xf32> to vector<3x128xf32>
    %40 = tpu.concatenate %34, %35, %36, %37, %38, %39 in 0 : vector<3x128xf32>, vector<3x128xf32>, vector<3x128xf32>, vector<3x128xf32>, vector<3x128xf32>, vector<3x128xf32> -> vector<18x128xf32>
    %c1 = arith.constant 1 : index
    %c0_10 = arith.constant 0 : index
    %c0_11 = arith.constant 0 : index
    %41 = vector.load %arg3[%c1, %c0_10, %c0_11] : memref<9x128x128xf32, #tpu.memory_space<vmem>>, vector<1x128x128xf32>
    %42 = vector.shape_cast %41 : vector<1x128x128xf32> to vector<128x128xf32>
    %cst_12 = arith.constant dense<0.000000e+00> : vector<18x128xf32>
    %43 = tpu.matmul %40, %42, %cst_12 {dimension_numbers = #tpu.dot_dimension_numbers<[1], [0], [0], [1], [0, 0, 1, 1], [], []>} : vector<18x128xf32>, vector<128x128xf32>, vector<18x128xf32> -> vector<18x128xf32>
    %44 = arith.addf %33, %43 : vector<18x128xf32>
    %45 = vector.extract_strided_slice %13 {offsets = [2, 0], sizes = [3, 128], strides = [1, 1]} : vector<25x128xf32> to vector<3x128xf32>
    %46 = vector.extract_strided_slice %13 {offsets = [7, 0], sizes = [3, 128], strides = [1, 1]} : vector<25x128xf32> to vector<3x128xf32>
    %47 = vector.extract_strided_slice %13 {offsets = [12, 0], sizes = [3, 128], strides = [1, 1]} : vector<25x128xf32> to vector<3x128xf32>
    %48 = vector.extract_strided_slice %21 {offsets = [2, 0], sizes = [3, 128], strides = [1, 1]} : vector<25x128xf32> to vector<3x128xf32>
    %49 = vector.extract_strided_slice %21 {offsets = [7, 0], sizes = [3, 128], strides = [1, 1]} : vector<25x128xf32> to vector<3x128xf32>
    %50 = vector.extract_strided_slice %21 {offsets = [12, 0], sizes = [3, 128], strides = [1, 1]} : vector<25x128xf32> to vector<3x128xf32>
    %51 = tpu.concatenate %45, %46, %47, %48, %49, %50 in 0 : vector<3x128xf32>, vector<3x128xf32>, vector<3x128xf32>, vector<3x128xf32>, vector<3x128xf32>, vector<3x128xf32> -> vector<18x128xf32>
    %c2 = arith.constant 2 : index
    %c0_13 = arith.constant 0 : index
    %c0_14 = arith.constant 0 : index
    %52 = vector.load %arg3[%c2, %c0_13, %c0_14] : memref<9x128x128xf32, #tpu.memory_space<vmem>>, vector<1x128x128xf32>
    %53 = vector.shape_cast %52 : vector<1x128x128xf32> to vector<128x128xf32>
    %cst_15 = arith.constant dense<0.000000e+00> : vector<18x128xf32>
    %54 = tpu.matmul %51, %53, %cst_15 {dimension_numbers = #tpu.dot_dimension_numbers<[1], [0], [0], [1], [0, 0, 1, 1], [], []>} : vector<18x128xf32>, vector<128x128xf32>, vector<18x128xf32> -> vector<18x128xf32>
    %55 = arith.addf %44, %54 : vector<18x128xf32>
    %56 = vector.extract_strided_slice %13 {offsets = [5, 0], sizes = [3, 128], strides = [1, 1]} : vector<25x128xf32> to vector<3x128xf32>
    %57 = vector.extract_strided_slice %13 {offsets = [10, 0], sizes = [3, 128], strides = [1, 1]} : vector<25x128xf32> to vector<3x128xf32>
    %58 = vector.extract_strided_slice %13 {offsets = [15, 0], sizes = [3, 128], strides = [1, 1]} : vector<25x128xf32> to vector<3x128xf32>
    %59 = vector.extract_strided_slice %21 {offsets = [5, 0], sizes = [3, 128], strides = [1, 1]} : vector<25x128xf32> to vector<3x128xf32>
    %60 = vector.extract_strided_slice %21 {offsets = [10, 0], sizes = [3, 128], strides = [1, 1]} : vector<25x128xf32> to vector<3x128xf32>
    %61 = vector.extract_strided_slice %21 {offsets = [15, 0], sizes = [3, 128], strides = [1, 1]} : vector<25x128xf32> to vector<3x128xf32>
    %62 = tpu.concatenate %56, %57, %58, %59, %60, %61 in 0 : vector<3x128xf32>, vector<3x128xf32>, vector<3x128xf32>, vector<3x128xf32>, vector<3x128xf32>, vector<3x128xf32> -> vector<18x128xf32>
    %c3 = arith.constant 3 : index
    %c0_16 = arith.constant 0 : index
    %c0_17 = arith.constant 0 : index
    %63 = vector.load %arg3[%c3, %c0_16, %c0_17] : memref<9x128x128xf32, #tpu.memory_space<vmem>>, vector<1x128x128xf32>
    %64 = vector.shape_cast %63 : vector<1x128x128xf32> to vector<128x128xf32>
    %cst_18 = arith.constant dense<0.000000e+00> : vector<18x128xf32>
    %65 = tpu.matmul %62, %64, %cst_18 {dimension_numbers = #tpu.dot_dimension_numbers<[1], [0], [0], [1], [0, 0, 1, 1], [], []>} : vector<18x128xf32>, vector<128x128xf32>, vector<18x128xf32> -> vector<18x128xf32>
    %66 = arith.addf %55, %65 : vector<18x128xf32>
    %67 = vector.extract_strided_slice %13 {offsets = [6, 0], sizes = [3, 128], strides = [1, 1]} : vector<25x128xf32> to vector<3x128xf32>
    %68 = vector.extract_strided_slice %13 {offsets = [11, 0], sizes = [3, 128], strides = [1, 1]} : vector<25x128xf32> to vector<3x128xf32>
    %69 = vector.extract_strided_slice %13 {offsets = [16, 0], sizes = [3, 128], strides = [1, 1]} : vector<25x128xf32> to vector<3x128xf32>
    %70 = vector.extract_strided_slice %21 {offsets = [6, 0], sizes = [3, 128], strides = [1, 1]} : vector<25x128xf32> to vector<3x128xf32>
    %71 = vector.extract_strided_slice %21 {offsets = [11, 0], sizes = [3, 128], strides = [1, 1]} : vector<25x128xf32> to vector<3x128xf32>
    %72 = vector.extract_strided_slice %21 {offsets = [16, 0], sizes = [3, 128], strides = [1, 1]} : vector<25x128xf32> to vector<3x128xf32>
    %73 = tpu.concatenate %67, %68, %69, %70, %71, %72 in 0 : vector<3x128xf32>, vector<3x128xf32>, vector<3x128xf32>, vector<3x128xf32>, vector<3x128xf32>, vector<3x128xf32> -> vector<18x128xf32>
    %c4 = arith.constant 4 : index
    %c0_19 = arith.constant 0 : index
    %c0_20 = arith.constant 0 : index
    %74 = vector.load %arg3[%c4, %c0_19, %c0_20] : memref<9x128x128xf32, #tpu.memory_space<vmem>>, vector<1x128x128xf32>
    %75 = vector.shape_cast %74 : vector<1x128x128xf32> to vector<128x128xf32>
    %cst_21 = arith.constant dense<0.000000e+00> : vector<18x128xf32>
    %76 = tpu.matmul %73, %75, %cst_21 {dimension_numbers = #tpu.dot_dimension_numbers<[1], [0], [0], [1], [0, 0, 1, 1], [], []>} : vector<18x128xf32>, vector<128x128xf32>, vector<18x128xf32> -> vector<18x128xf32>
    %77 = arith.addf %66, %76 : vector<18x128xf32>
    %78 = vector.extract_strided_slice %13 {offsets = [7, 0], sizes = [3, 128], strides = [1, 1]} : vector<25x128xf32> to vector<3x128xf32>
    %79 = vector.extract_strided_slice %13 {offsets = [12, 0], sizes = [3, 128], strides = [1, 1]} : vector<25x128xf32> to vector<3x128xf32>
    %80 = vector.extract_strided_slice %13 {offsets = [17, 0], sizes = [3, 128], strides = [1, 1]} : vector<25x128xf32> to vector<3x128xf32>
    %81 = vector.extract_strided_slice %21 {offsets = [7, 0], sizes = [3, 128], strides = [1, 1]} : vector<25x128xf32> to vector<3x128xf32>
    %82 = vector.extract_strided_slice %21 {offsets = [12, 0], sizes = [3, 128], strides = [1, 1]} : vector<25x128xf32> to vector<3x128xf32>
    %83 = vector.extract_strided_slice %21 {offsets = [17, 0], sizes = [3, 128], strides = [1, 1]} : vector<25x128xf32> to vector<3x128xf32>
    %84 = tpu.concatenate %78, %79, %80, %81, %82, %83 in 0 : vector<3x128xf32>, vector<3x128xf32>, vector<3x128xf32>, vector<3x128xf32>, vector<3x128xf32>, vector<3x128xf32> -> vector<18x128xf32>
    %c5 = arith.constant 5 : index
    %c0_22 = arith.constant 0 : index
    %c0_23 = arith.constant 0 : index
    %85 = vector.load %arg3[%c5, %c0_22, %c0_23] : memref<9x128x128xf32, #tpu.memory_space<vmem>>, vector<1x128x128xf32>
    %86 = vector.shape_cast %85 : vector<1x128x128xf32> to vector<128x128xf32>
    %cst_24 = arith.constant dense<0.000000e+00> : vector<18x128xf32>
    %87 = tpu.matmul %84, %86, %cst_24 {dimension_numbers = #tpu.dot_dimension_numbers<[1], [0], [0], [1], [0, 0, 1, 1], [], []>} : vector<18x128xf32>, vector<128x128xf32>, vector<18x128xf32> -> vector<18x128xf32>
    %88 = arith.addf %77, %87 : vector<18x128xf32>
    %89 = vector.extract_strided_slice %13 {offsets = [10, 0], sizes = [3, 128], strides = [1, 1]} : vector<25x128xf32> to vector<3x128xf32>
    %90 = vector.extract_strided_slice %13 {offsets = [15, 0], sizes = [3, 128], strides = [1, 1]} : vector<25x128xf32> to vector<3x128xf32>
    %91 = vector.extract_strided_slice %13 {offsets = [20, 0], sizes = [3, 128], strides = [1, 1]} : vector<25x128xf32> to vector<3x128xf32>
    %92 = vector.extract_strided_slice %21 {offsets = [10, 0], sizes = [3, 128], strides = [1, 1]} : vector<25x128xf32> to vector<3x128xf32>
    %93 = vector.extract_strided_slice %21 {offsets = [15, 0], sizes = [3, 128], strides = [1, 1]} : vector<25x128xf32> to vector<3x128xf32>
    %94 = vector.extract_strided_slice %21 {offsets = [20, 0], sizes = [3, 128], strides = [1, 1]} : vector<25x128xf32> to vector<3x128xf32>
    %95 = tpu.concatenate %89, %90, %91, %92, %93, %94 in 0 : vector<3x128xf32>, vector<3x128xf32>, vector<3x128xf32>, vector<3x128xf32>, vector<3x128xf32>, vector<3x128xf32> -> vector<18x128xf32>
    %c6 = arith.constant 6 : index
    %c0_25 = arith.constant 0 : index
    %c0_26 = arith.constant 0 : index
    %96 = vector.load %arg3[%c6, %c0_25, %c0_26] : memref<9x128x128xf32, #tpu.memory_space<vmem>>, vector<1x128x128xf32>
    %97 = vector.shape_cast %96 : vector<1x128x128xf32> to vector<128x128xf32>
    %cst_27 = arith.constant dense<0.000000e+00> : vector<18x128xf32>
    %98 = tpu.matmul %95, %97, %cst_27 {dimension_numbers = #tpu.dot_dimension_numbers<[1], [0], [0], [1], [0, 0, 1, 1], [], []>} : vector<18x128xf32>, vector<128x128xf32>, vector<18x128xf32> -> vector<18x128xf32>
    %99 = arith.addf %88, %98 : vector<18x128xf32>
    %100 = vector.extract_strided_slice %13 {offsets = [11, 0], sizes = [3, 128], strides = [1, 1]} : vector<25x128xf32> to vector<3x128xf32>
    %101 = vector.extract_strided_slice %13 {offsets = [16, 0], sizes = [3, 128], strides = [1, 1]} : vector<25x128xf32> to vector<3x128xf32>
    %102 = vector.extract_strided_slice %13 {offsets = [21, 0], sizes = [3, 128], strides = [1, 1]} : vector<25x128xf32> to vector<3x128xf32>
    %103 = vector.extract_strided_slice %21 {offsets = [11, 0], sizes = [3, 128], strides = [1, 1]} : vector<25x128xf32> to vector<3x128xf32>
    %104 = vector.extract_strided_slice %21 {offsets = [16, 0], sizes = [3, 128], strides = [1, 1]} : vector<25x128xf32> to vector<3x128xf32>
    %105 = vector.extract_strided_slice %21 {offsets = [21, 0], sizes = [3, 128], strides = [1, 1]} : vector<25x128xf32> to vector<3x128xf32>
    %106 = tpu.concatenate %100, %101, %102, %103, %104, %105 in 0 : vector<3x128xf32>, vector<3x128xf32>, vector<3x128xf32>, vector<3x128xf32>, vector<3x128xf32>, vector<3x128xf32> -> vector<18x128xf32>
    %c7 = arith.constant 7 : index
    %c0_28 = arith.constant 0 : index
    %c0_29 = arith.constant 0 : index
    %107 = vector.load %arg3[%c7, %c0_28, %c0_29] : memref<9x128x128xf32, #tpu.memory_space<vmem>>, vector<1x128x128xf32>
    %108 = vector.shape_cast %107 : vector<1x128x128xf32> to vector<128x128xf32>
    %cst_30 = arith.constant dense<0.000000e+00> : vector<18x128xf32>
    %109 = tpu.matmul %106, %108, %cst_30 {dimension_numbers = #tpu.dot_dimension_numbers<[1], [0], [0], [1], [0, 0, 1, 1], [], []>} : vector<18x128xf32>, vector<128x128xf32>, vector<18x128xf32> -> vector<18x128xf32>
    %110 = arith.addf %99, %109 : vector<18x128xf32>
    %111 = vector.extract_strided_slice %13 {offsets = [12, 0], sizes = [3, 128], strides = [1, 1]} : vector<25x128xf32> to vector<3x128xf32>
    %112 = vector.extract_strided_slice %13 {offsets = [17, 0], sizes = [3, 128], strides = [1, 1]} : vector<25x128xf32> to vector<3x128xf32>
    %113 = vector.extract_strided_slice %13 {offsets = [22, 0], sizes = [3, 128], strides = [1, 1]} : vector<25x128xf32> to vector<3x128xf32>
    %114 = vector.extract_strided_slice %21 {offsets = [12, 0], sizes = [3, 128], strides = [1, 1]} : vector<25x128xf32> to vector<3x128xf32>
    %115 = vector.extract_strided_slice %21 {offsets = [17, 0], sizes = [3, 128], strides = [1, 1]} : vector<25x128xf32> to vector<3x128xf32>
    %116 = vector.extract_strided_slice %21 {offsets = [22, 0], sizes = [3, 128], strides = [1, 1]} : vector<25x128xf32> to vector<3x128xf32>
    %117 = tpu.concatenate %111, %112, %113, %114, %115, %116 in 0 : vector<3x128xf32>, vector<3x128xf32>, vector<3x128xf32>, vector<3x128xf32>, vector<3x128xf32>, vector<3x128xf32> -> vector<18x128xf32>
    %c8 = arith.constant 8 : index
    %c0_31 = arith.constant 0 : index
    %c0_32 = arith.constant 0 : index
    %118 = vector.load %arg3[%c8, %c0_31, %c0_32] : memref<9x128x128xf32, #tpu.memory_space<vmem>>, vector<1x128x128xf32>
    %119 = vector.shape_cast %118 : vector<1x128x128xf32> to vector<128x128xf32>
    %cst_33 = arith.constant dense<0.000000e+00> : vector<18x128xf32>
    %120 = tpu.matmul %117, %119, %cst_33 {dimension_numbers = #tpu.dot_dimension_numbers<[1], [0], [0], [1], [0, 0, 1, 1], [], []>} : vector<18x128xf32>, vector<128x128xf32>, vector<18x128xf32> -> vector<18x128xf32>
    %121 = arith.addf %110, %120 : vector<18x128xf32>
    %c0_34 = arith.constant 0 : index
    %c0_35 = arith.constant 0 : index
    %122 = vector.load %arg4[%c0_34, %c0_35] : memref<1x128xf32, #tpu.memory_space<vmem>>, vector<1x128xf32>
    %123 = vector.broadcast %122 : vector<1x128xf32> to vector<18x128xf32>
    %124 = arith.addf %121, %123 : vector<18x128xf32>
    %125 = math.tanh %124 : vector<18x128xf32>
    %126 = vector.extract_strided_slice %125 {offsets = [0, 0], sizes = [1, 128], strides = [1, 1]} : vector<18x128xf32> to vector<1x128xf32>
    %127 = vector.extract_strided_slice %125 {offsets = [1, 0], sizes = [1, 128], strides = [1, 1]} : vector<18x128xf32> to vector<1x128xf32>
    %128 = vector.extract_strided_slice %125 {offsets = [2, 0], sizes = [1, 128], strides = [1, 1]} : vector<18x128xf32> to vector<1x128xf32>
    %129 = vector.extract_strided_slice %125 {offsets = [3, 0], sizes = [1, 128], strides = [1, 1]} : vector<18x128xf32> to vector<1x128xf32>
    %130 = vector.extract_strided_slice %125 {offsets = [4, 0], sizes = [1, 128], strides = [1, 1]} : vector<18x128xf32> to vector<1x128xf32>
    %131 = vector.extract_strided_slice %125 {offsets = [5, 0], sizes = [1, 128], strides = [1, 1]} : vector<18x128xf32> to vector<1x128xf32>
    %132 = vector.extract_strided_slice %125 {offsets = [6, 0], sizes = [1, 128], strides = [1, 1]} : vector<18x128xf32> to vector<1x128xf32>
    %133 = vector.extract_strided_slice %125 {offsets = [7, 0], sizes = [1, 128], strides = [1, 1]} : vector<18x128xf32> to vector<1x128xf32>
    %134 = vector.extract_strided_slice %125 {offsets = [8, 0], sizes = [1, 128], strides = [1, 1]} : vector<18x128xf32> to vector<1x128xf32>
    %135 = tpu.concatenate %126, %127, %128, %129, %130, %131, %132, %133, %134 in 1 : vector<1x128xf32>, vector<1x128xf32>, vector<1x128xf32>, vector<1x128xf32>, vector<1x128xf32>, vector<1x128xf32>, vector<1x128xf32>, vector<1x128xf32>, vector<1x128xf32> -> vector<1x1152xf32>
    %136 = vector.extract_strided_slice %125 {offsets = [9, 0], sizes = [1, 128], strides = [1, 1]} : vector<18x128xf32> to vector<1x128xf32>
    %137 = vector.extract_strided_slice %125 {offsets = [10, 0], sizes = [1, 128], strides = [1, 1]} : vector<18x128xf32> to vector<1x128xf32>
    %138 = vector.extract_strided_slice %125 {offsets = [11, 0], sizes = [1, 128], strides = [1, 1]} : vector<18x128xf32> to vector<1x128xf32>
    %139 = vector.extract_strided_slice %125 {offsets = [12, 0], sizes = [1, 128], strides = [1, 1]} : vector<18x128xf32> to vector<1x128xf32>
    %140 = vector.extract_strided_slice %125 {offsets = [13, 0], sizes = [1, 128], strides = [1, 1]} : vector<18x128xf32> to vector<1x128xf32>
    %141 = vector.extract_strided_slice %125 {offsets = [14, 0], sizes = [1, 128], strides = [1, 1]} : vector<18x128xf32> to vector<1x128xf32>
    %142 = vector.extract_strided_slice %125 {offsets = [15, 0], sizes = [1, 128], strides = [1, 1]} : vector<18x128xf32> to vector<1x128xf32>
    %143 = vector.extract_strided_slice %125 {offsets = [16, 0], sizes = [1, 128], strides = [1, 1]} : vector<18x128xf32> to vector<1x128xf32>
    %144 = vector.extract_strided_slice %125 {offsets = [17, 0], sizes = [1, 128], strides = [1, 1]} : vector<18x128xf32> to vector<1x128xf32>
    %145 = tpu.concatenate %136, %137, %138, %139, %140, %141, %142, %143, %144 in 1 : vector<1x128xf32>, vector<1x128xf32>, vector<1x128xf32>, vector<1x128xf32>, vector<1x128xf32>, vector<1x128xf32>, vector<1x128xf32>, vector<1x128xf32>, vector<1x128xf32> -> vector<1x1152xf32>
    %146 = tpu.concatenate %135, %145 in 0 : vector<1x1152xf32>, vector<1x1152xf32> -> vector<2x1152xf32>
    %c0_36 = arith.constant 0 : index
    %c0_37 = arith.constant 0 : index
    %147 = vector.load %arg5[%c0_36, %c0_37] : memref<1152x128xf32, #tpu.memory_space<vmem>>, vector<1152x128xf32>
    %cst_38 = arith.constant dense<0.000000e+00> : vector<2x128xf32>
    %148 = tpu.matmul %146, %147, %cst_38 {dimension_numbers = #tpu.dot_dimension_numbers<[1], [0], [0], [1], [0, 0, 1, 1], [], []>} : vector<2x1152xf32>, vector<1152x128xf32>, vector<2x128xf32> -> vector<2x128xf32>
    %c0_39 = arith.constant 0 : index
    %c0_40 = arith.constant 0 : index
    %149 = vector.load %arg6[%c0_39, %c0_40] : memref<1x128xf32, #tpu.memory_space<vmem>>, vector<1x128xf32>
    %150 = vector.broadcast %149 : vector<1x128xf32> to vector<2x128xf32>
    %151 = arith.addf %148, %150 : vector<2x128xf32>
    %152 = math.tanh %151 : vector<2x128xf32>
    %153 = vector.extract_strided_slice %152 {offsets = [0, 0], sizes = [2, 10], strides = [1, 1]} : vector<2x128xf32> to vector<2x10xf32>
    %c0_41 = arith.constant 0 : index
    %c0_42 = arith.constant 0 : index
    %154 = vector.load %arg7[%c0_41, %c0_42] : memref<2x10xf32, #tpu.memory_space<vmem>>, vector<2x10xf32>
    tpu.vector_store %arg7[%c0_41, %c0_42], %153 {strides = array<i32>} : memref<2x10xf32, #tpu.memory_space<vmem>>, vector<2x10xf32>,
    return
  }
}

</mosaic_0001>

<llo_original>
// kernel: classifier_forward.1
$region0: #{classifier_forward.1}
  #allocation0 [shape = 'u32[]', space=smem, size = 0x4, offset = 0x4, fixed_abs, tag = 'smem constant byte address 0x4 - core index']
  #allocation1 [shape = 'u32[72,128]{1,0:T(1,128)}', space=vmem, size = 0x9000, scoped, tag = 'internal scratch']
  %s0 = inlined_call_operand.vmem [shape: f32[256,25], index: 0, kind: input, shape index: {}]
  %s1 = inlined_call_operand.vmem [shape: f32[25,128], index: 1, kind: input, shape index: {}]
  %s2 = inlined_call_operand.vmem [shape: f32[1,128], index: 2, kind: input, shape index: {}]
  %s3 = inlined_call_operand.vmem [shape: f32[9,128,128], index: 3, kind: input, shape index: {}]
  %s4 = inlined_call_operand.vmem [shape: f32[1,128], index: 4, kind: input, shape index: {}]
  %s5 = inlined_call_operand.vmem [shape: f32[1152,128], index: 5, kind: input, shape index: {}]
  %s6 = inlined_call_operand.vmem [shape: f32[1,128], index: 6, kind: input, shape index: {}]
  %s7 = inlined_call_operand.hbm [shape: f32[2,10], index: 7, kind: output, shape index: {}]
  %s8 = sld [smem:[#allocation0]]
  $region38: #{classifier_forward.1} parent=0
    _
  %s10 = ssub.s32 1, %s8
  %s11 = scalar_select 0, %s10, %s8
  $region1: #{classifier_forward.1} parent=0
    #allocation2 [shape = 'u8[1024]{0}', space=vmem, size = 0x400, scoped, tag = 'output window, operand 0, single buffered']
    #allocation3 [shape = 's32[1]{0}', space=sflag, size = 0x4, scoped, tag = 'scoped memory for classifier_forward.1']
    %12 = vsyncpa [#allocation3], 0
    // Predicated region
    $region2: #{classifier_forward.1} parent=1 // pred_check
      _
    $region3: #{classifier_forward.1} parent=1 // pred_check_branch
      %14 = sbr.rel (0) target = $region5
    $region4: #{classifier_forward.1} parent=1 // pred_region
      _
    $region5: #{classifier_forward.1} parent=1 // pred_fallthru
      _
    // Predicated region
    $region6: #{classifier_forward.1} parent=1 // pred_check
      _
    $region7: #{classifier_forward.1} parent=1 // pred_check_branch
      %16 = sbr.rel (0) target = $region9
    $region8: #{classifier_forward.1} parent=1 // pred_region
      _
    $region9: #{classifier_forward.1} parent=1 // pred_fallthru
      _
    // Predicated region
    $region10: #{classifier_forward.1} parent=1 // pred_check
      _
    $region11: #{classifier_forward.1} parent=1 // pred_check_branch
      %18 = sbr.rel (0) target = $region13
    $region12: #{classifier_forward.1} parent=1 // pred_region
      _
    $region13: #{classifier_forward.1} parent=1 // pred_fallthru
      _
    // Predicated region
    $region14: #{classifier_forward.1} parent=1 // pred_check
      _
    $region15: #{classifier_forward.1} parent=1 // pred_check_branch
      %20 = sbr.rel (0) target = $region17
    $region16: #{classifier_forward.1} parent=1 // pred_region
      _
    $region17: #{classifier_forward.1} parent=1 // pred_fallthru
      _
    // Predicated region
    $region18: #{classifier_forward.1} parent=1 // pred_check
      _
    $region19: #{classifier_forward.1} parent=1 // pred_check_branch
      %22 = sbr.rel (0) target = $region21
    $region20: #{classifier_forward.1} parent=1 // pred_region
      _
    $region21: #{classifier_forward.1} parent=1 // pred_fallthru
      _
    // Predicated region
    $region22: #{classifier_forward.1} parent=1 // pred_check
      _
    $region23: #{classifier_forward.1} parent=1 // pred_check_branch
      %24 = sbr.rel (0) target = $region25
    $region24: #{classifier_forward.1} parent=1 // pred_region
      _
    $region25: #{classifier_forward.1} parent=1 // pred_fallthru
      _
    // Predicated region
    $region26: #{classifier_forward.1} parent=1 // pred_check
      _
    $region27: #{classifier_forward.1} parent=1 // pred_check_branch
      %26 = sbr.rel (0) target = $region29
    $region28: #{classifier_forward.1} parent=1 // pred_region
      _
    $region29: #{classifier_forward.1} parent=1 // pred_fallthru
      _
    %v27 = vld [vmem:[%s0] sm:$0xff]
    %v28 = vld [vmem:[%s0 + $0x8] sm:$0xff]
    %v29 = vld [vmem:[%s0 + $0x10] sm:$0xff]
    %v30 = vld [vmem:[%s0 + $0x18] sm:$0xff]
    %v31 = vld [vmem:[%s0 + $0x20] sm:$0xff]
    %v32 = vld [vmem:[%s0 + $0x28] sm:$0xff]
    %v33 = vld [vmem:[%s0 + $0x30] sm:$0xff]
    %v34 = vld [vmem:[%s0 + $0x38] sm:$0xff]
    %v35 = vld [vmem:[%s0 + $0x40] sm:$0xff]
    %v36 = vld [vmem:[%s0 + $0x48] sm:$0xff]
    %v37 = vld [vmem:[%s0 + $0x50] sm:$0xff]
    %v38 = vld [vmem:[%s0 + $0x58] sm:$0xff]
    %v39 = vld [vmem:[%s0 + $0x60] sm:$0xff]
    %v40 = vld [vmem:[%s0 + $0x68] sm:$0xff]
    %v41 = vld [vmem:[%s0 + $0x70] sm:$0xff]
    %v42 = vld [vmem:[%s0 + $0x78] sm:$0xff]
    %v43 = vld [vmem:[%s0 + $0x80] sm:$0xff]
    %v44 = vld [vmem:[%s0 + $0x88] sm:$0xff]
    %v45 = vld [vmem:[%s0 + $0x90] sm:$0xff]
    %v46 = vld [vmem:[%s0 + $0x98] sm:$0xff]
    %v47 = vld [vmem:[%s0 + $0xa0] sm:$0xff]
    %v48 = vld [vmem:[%s0 + $0xa8] sm:$0xff]
    %v49 = vld [vmem:[%s0 + $0xb0] sm:$0xff]
    %v50 = vld [vmem:[%s0 + $0xb8] sm:$0xff]
    %v51 = vld [vmem:[%s0 + $0xc0] sm:$0xff]
    %v52 = vld [vmem:[%s0 + $0xc8] sm:$0xff]
    %v53 = vld [vmem:[%s0 + $0xd0] sm:$0xff]
    %v54 = vld [vmem:[%s0 + $0xd8] sm:$0xff]
    %v55 = vld [vmem:[%s0 + $0xe0] sm:$0xff]
    %v56 = vld [vmem:[%s0 + $0xe8] sm:$0xff]
    %v57 = vld [vmem:[%s0 + $0xf0] sm:$0xff]
    %v58 = vld [vmem:[%s0 + $0xf8] sm:$0xff]
    %v59 = vld [vmem:[%s1] sm:$0xff]
    %v60 = vld [vmem:[%s1 + $0x8] sm:$0xff]
    %v61 = vld [vmem:[%s1 + $0x10] sm:$0xff]
    %v62 = vld [vmem:[%s1 + $0x18] sm:$0x1]
    %v63 = vld [vmem:[%s2] sm:$0x1]
    %v65 = vperm.slane %v63, 0
    %vm67 = vcmask 203776
    %v69 = vsel %vm67, %v27, 0
    %v72 = vsel %vm67, %v28, 0
    %v75 = vsel %vm67, %v29, 0
    %v78 = vsel %vm67, %v30, 0
    %v81 = vsel %vm67, %v31, 0
    %v84 = vsel %vm67, %v32, 0
    %v87 = vsel %vm67, %v33, 0
    %v90 = vsel %vm67, %v34, 0
    %v93 = vsel %vm67, %v35, 0
    %v96 = vsel %vm67, %v36, 0
    %v99 = vsel %vm67, %v37, 0
    %v102 = vsel %vm67, %v38, 0
    %v105 = vsel %vm67, %v39, 0
    %v108 = vsel %vm67, %v40, 0
    %v111 = vsel %vm67, %v41, 0
    %v114 = vsel %vm67, %v42, 0
    %v117 = vsel %vm67, %v43, 0
    %v120 = vsel %vm67, %v44, 0
    %v123 = vsel %vm67, %v45, 0
    %v126 = vsel %vm67, %v46, 0
    %v129 = vsel %vm67, %v47, 0
    %v132 = vsel %vm67, %v48, 0
    %v135 = vsel %vm67, %v49, 0
    %v138 = vsel %vm67, %v50, 0
    %v141 = vsel %vm67, %v51, 0
    %v144 = vsel %vm67, %v52, 0
    %v147 = vsel %vm67, %v53, 0
    %v150 = vsel %vm67, %v54, 0
    %v153 = vsel %vm67, %v55, 0
    %v156 = vsel %vm67, %v56, 0
    %v159 = vsel %vm67, %v57, 0
    %v162 = vsel %vm67, %v58, 0
    %vm164 = vcmask 1040384
    %v166 = vsel %vm164, %v62, 0
    %168 = vmatpush.msra.mxu0 0.0
    %169 = vmatpush.msra.mxu0 0.0
    %170 = vmatpush.msra.mxu0 0.0
    %171 = vmatpush.msra.mxu0 0.0
    %172 = vmatpush.msra.mxu0 0.0
    %173 = vmatpush.msra.mxu0 0.0
    %174 = vmatpush.msra.mxu0 0.0
    %175 = vmatpush.msra.mxu0 0.0
    %176 = vmatpush.msra.mxu0 0.0
    %177 = vmatpush.msra.mxu0 0.0
    %178 = vmatpush.msra.mxu0 0.0
    %179 = vmatpush.msra.mxu0 0.0
    %180 = vmatpush.msra.mxu0 %v166
    %181 = vmatpush.msra.mxu0 %v61
    %182 = vmatpush.msra.mxu0 %v60
    %183 = vmatpush.msra.mxu0 %v59
    %184 = vmatmul.f32.gmra.mxu0 %v69
    %v185 = vpop.f32.mrf.mxu0
    %v186 = vadd.f32 %v65, %v185
    %187 = vmatmul.f32.gmra.mxu0 %v72
    %v188 = vpop.f32.mrf.mxu0
    %v189 = vadd.f32 %v65, %v188
    %190 = vmatmul.f32.gmra.mxu0 %v75
    %v191 = vpop.f32.mrf.mxu0
    %v192 = vadd.f32 %v65, %v191
    %193 = vmatmul.f32.gmra.mxu0 %v78
    %v194 = vpop.f32.mrf.mxu0
    %v195 = vadd.f32 %v65, %v194
    %196 = vmatmul.f32.gmra.mxu0 %v81
    %v197 = vpop.f32.mrf.mxu0
    %v198 = vadd.f32 %v65, %v197
    %199 = vmatmul.f32.gmra.mxu0 %v84
    %v200 = vpop.f32.mrf.mxu0
    %v201 = vadd.f32 %v65, %v200
    %202 = vmatmul.f32.gmra.mxu0 %v87
    %v203 = vpop.f32.mrf.mxu0
    %v204 = vadd.f32 %v65, %v203
    %205 = vmatmul.f32.gmra.mxu0 %v90
    %v206 = vpop.f32.mrf.mxu0
    %v207 = vadd.f32 %v65, %v206
    %208 = vmatmul.f32.gmra.mxu0 %v93
    %v209 = vpop.f32.mrf.mxu0
    %v210 = vadd.f32 %v65, %v209
    %211 = vmatmul.f32.gmra.mxu0 %v96
    %v212 = vpop.f32.mrf.mxu0
    %v213 = vadd.f32 %v65, %v212
    %214 = vmatmul.f32.gmra.mxu0 %v99
    %v215 = vpop.f32.mrf.mxu0
    %v216 = vadd.f32 %v65, %v215
    %217 = vmatmul.f32.gmra.mxu0 %v102
    %v218 = vpop.f32.mrf.mxu0
    %v219 = vadd.f32 %v65, %v218
    %220 = vmatmul.f32.gmra.mxu0 %v105
    %v221 = vpop.f32.mrf.mxu0
    %v222 = vadd.f32 %v65, %v221
    %223 = vmatmul.f32.gmra.mxu0 %v108
    %v224 = vpop.f32.mrf.mxu0
    %v225 = vadd.f32 %v65, %v224
    %226 = vmatmul.f32.gmra.mxu0 %v111
    %v227 = vpop.f32.mrf.mxu0
    %v228 = vadd.f32 %v65, %v227
    %229 = vmatmul.f32.gmra.mxu0 %v114
    %v230 = vpop.f32.mrf.mxu0
    %v231 = vadd.f32 %v65, %v230
    %232 = vmatmul.f32.gmra.mxu0 %v117
    %v233 = vpop.f32.mrf.mxu0
    %v234 = vadd.f32 %v65, %v233
    %235 = vmatmul.f32.gmra.mxu0 %v120
    %v236 = vpop.f32.mrf.mxu0
    %v237 = vadd.f32 %v65, %v236
    %238 = vmatmul.f32.gmra.mxu0 %v123
    %v239 = vpop.f32.mrf.mxu0
    %v240 = vadd.f32 %v65, %v239
    %241 = vmatmul.f32.gmra.mxu0 %v126
    %v242 = vpop.f32.mrf.mxu0
    %v243 = vadd.f32 %v65, %v242
    %244 = vmatmul.f32.gmra.mxu0 %v129
    %v245 = vpop.f32.mrf.mxu0
    %v246 = vadd.f32 %v65, %v245
    %247 = vmatmul.f32.gmra.mxu0 %v132
    %v248 = vpop.f32.mrf.mxu0
    %v249 = vadd.f32 %v65, %v248
    %250 = vmatmul.f32.gmra.mxu0 %v135
    %v251 = vpop.f32.mrf.mxu0
    %v252 = vadd.f32 %v65, %v251
    %253 = vmatmul.f32.gmra.mxu0 %v138
    %v254 = vpop.f32.mrf.mxu0
    %v255 = vadd.f32 %v65, %v254
    %256 = vmatmul.f32.gmra.mxu0 %v141
    %v257 = vpop.f32.mrf.mxu0
    %v258 = vadd.f32 %v65, %v257
    %259 = vmatmul.f32.gmra.mxu0 %v144
    %v260 = vpop.f32.mrf.mxu0
    %v261 = vadd.f32 %v65, %v260
    %262 = vmatmul.f32.gmra.mxu0 %v147
    %v263 = vpop.f32.mrf.mxu0
    %v264 = vadd.f32 %v65, %v263
    %265 = vmatmul.f32.gmra.mxu0 %v150
    %v266 = vpop.f32.mrf.mxu0
    %v267 = vadd.f32 %v65, %v266
    %268 = vmatmul.f32.gmra.mxu0 %v153
    %v269 = vpop.f32.mrf.mxu0
    %v270 = vadd.f32 %v65, %v269
    %271 = vmatmul.f32.gmra.mxu0 %v156
    %v272 = vpop.f32.mrf.mxu0
    %v273 = vadd.f32 %v65, %v272
    %274 = vmatmul.f32.gmra.mxu0 %v159
    %v275 = vpop.f32.mrf.mxu0
    %v276 = vadd.f32 %v65, %v275
    %277 = vmatmul.f32.gmra.mxu0 %v162
    %v278 = vpop.f32.mrf.mxu0
    %v279 = vadd.f32 %v65, %v278
    %280 = vdwg.mxu0
    %v281 = vmax.f32 %v186, %v198
    %v282 = vmax.f32 %v189, %v201
    %v283 = vmax.f32 %v192, %v204
    %v284 = vmax.f32 %v195, %v207
    %v285 = vmax.f32 %v210, %v222
    %v286 = vmax.f32 %v213, %v225
    %v287 = vmax.f32 %v216, %v228
    %v288 = vmax.f32 %v219, %v231
    %v289 = vmax.f32 %v281, %v285
    %v290 = vmax.f32 %v282, %v286
    %v291 = vmax.f32 %v283, %v287
    %v292 = vmax.f32 %v284, %v288
    %v293 = vtanh.pop %v289
    %v294 = vtanh.pop %v290
    %v295 = vtanh.pop %v291
    %v296 = vtanh.pop %v292
    %v297 = vmax.f32 %v234, %v246
    %v298 = vmax.f32 %v237, %v249
    %v299 = vmax.f32 %v240, %v252
    %v300 = vmax.f32 %v243, %v255
    %v301 = vmax.f32 %v258, %v270
    %v302 = vmax.f32 %v261, %v273
    %v303 = vmax.f32 %v264, %v276
    %v304 = vmax.f32 %v267, %v279
    %v305 = vmax.f32 %v297, %v301
    %v306 = vmax.f32 %v298, %v302
    %v307 = vmax.f32 %v299, %v303
    %v308 = vmax.f32 %v300, %v304
    %v309 = vtanh.pop %v305
    %v310 = vtanh.pop %v306
    %v311 = vtanh.pop %v307
    %v312 = vtanh.pop %v308
    %v314 = vrot.slane %v293, 2
    %v317 = vrot.slane %v294, 4
    %v320 = vrot.slane %v309, 7
    %v322 = vrot.slane %v309, 1
    %v325 = vrot.slane %v310, 3
    %vm327 = vcmask 1042432
    %v328 = vsel %vm327, %v293, %v314
    %vm329 = vcmask 1045504
    %v330 = vsel %vm329, %v328, %v317
    %v331 = vsel %vm164, %v317, %v320
    %vm332 = vcmask 1043456
    %v333 = vsel %vm332, %v331, %v322
    %vm334 = vcmask 1046528
    %v335 = vsel %vm334, %v333, %v325
    %v336 = vld [vmem:[%s3] sm:$0xff]
    %v337 = vld [vmem:[%s3 + $0x8] sm:$0xff]
    %v338 = vld [vmem:[%s3 + $0x10] sm:$0xff]
    %v339 = vld [vmem:[%s3 + $0x18] sm:$0xff]
    %v340 = vld [vmem:[%s3 + $0x20] sm:$0xff]
    %v341 = vld [vmem:[%s3 + $0x28] sm:$0xff]
    %v342 = vld [vmem:[%s3 + $0x30] sm:$0xff]
    %v343 = vld [vmem:[%s3 + $0x38] sm:$0xff]
    %v344 = vld [vmem:[%s3 + $0x40] sm:$0xff]
    %v345 = vld [vmem:[%s3 + $0x48] sm:$0xff]
    %v346 = vld [vmem:[%s3 + $0x50] sm:$0xff]
    %v347 = vld [vmem:[%s3 + $0x58] sm:$0xff]
    %v348 = vld [vmem:[%s3 + $0x60] sm:$0xff]
    %v349 = vld [vmem:[%s3 + $0x68] sm:$0xff]
    %v350 = vld [vmem:[%s3 + $0x70] sm:$0xff]
    %v351 = vld [vmem:[%s3 + $0x78] sm:$0xff]
    %v352 = vrot.slane %v293, 1
    %vm354 = vcmask 1044480
    %v355 = vrot.slane %v293, 3
    %v356 = vrot.slane %v294, 3
    %v357 = vsel %vm354, %v355, %v356
    %v359 = vrot.slane %v294, 5
    %v361 = vrot.slane %v309, 2
    %v362 = vrot.slane %v310, 2
    %v363 = vsel %vm329, %v361, %v362
    %v365 = vrot.slane %v310, 4
    %v367 = vsel %vm327, %v352, %v357
    %v368 = vsel %vm329, %v367, %v359
    %v369 = vsel %vm164, %v359, %v309
    %v370 = vsel %vm332, %v369, %v363
    %v371 = vsel %vm334, %v370, %v365
    %s372 = scalar_lea.vmem %s3, 128
    %v373 = vld [vmem:[%s372] sm:$0xff]
    %v374 = vld [vmem:[%s372 + $0x8] sm:$0xff]
    %v375 = vld [vmem:[%s372 + $0x10] sm:$0xff]
    %v376 = vld [vmem:[%s372 + $0x18] sm:$0xff]
    %v377 = vld [vmem:[%s372 + $0x20] sm:$0xff]
    %v378 = vld [vmem:[%s372 + $0x28] sm:$0xff]
    %v379 = vld [vmem:[%s372 + $0x30] sm:$0xff]
    %v380 = vld [vmem:[%s372 + $0x38] sm:$0xff]
    %v381 = vld [vmem:[%s372 + $0x40] sm:$0xff]
    %v382 = vld [vmem:[%s372 + $0x48] sm:$0xff]
    %v383 = vld [vmem:[%s372 + $0x50] sm:$0xff]
    %v384 = vld [vmem:[%s372 + $0x58] sm:$0xff]
    %v385 = vld [vmem:[%s372 + $0x60] sm:$0xff]
    %v386 = vld [vmem:[%s372 + $0x68] sm:$0xff]
    %v387 = vld [vmem:[%s372 + $0x70] sm:$0xff]
    %v388 = vld [vmem:[%s372 + $0x78] sm:$0xff]
    %389 = vmatpush.msra.mxu0 %v388
    %390 = vmatpush.msra.mxu0 %v387
    %391 = vmatpush.msra.mxu0 %v386
    %392 = vmatpush.msra.mxu0 %v385
    %393 = vmatpush.msra.mxu0 %v384
    %394 = vmatpush.msra.mxu0 %v383
    %395 = vmatpush.msra.mxu0 %v382
    %396 = vmatpush.msra.mxu0 %v381
    %397 = vmatpush.msra.mxu0 %v380
    %398 = vmatpush.msra.mxu0 %v379
    %399 = vmatpush.msra.mxu0 %v378
    %400 = vmatpush.msra.mxu0 %v377
    %401 = vmatpush.msra.mxu0 %v376
    %402 = vmatpush.msra.mxu0 %v375
    %403 = vmatpush.msra.mxu0 %v374
    %404 = vmatpush.msra.mxu0 %v373
    %405 = vmatmul.f32.gmra.mxu0 %v368
    %v406 = vpop.f32.mrf.mxu0
    %v407 = vadd.f32 0.0, %v406
    %408 = vmatmul.f32.gmra.mxu0 %v371
    %v409 = vpop.f32.mrf.mxu0
    %v410 = vadd.f32 0.0, %v409
    %411 = vmatmul.f32.gmra.mxu0 %v365
    %v412 = vpop.f32.mrf.mxu0
    %v413 = vadd.f32 0.0, %v412
    %414 = vdwg.mxu0
    %415 = vmatpush.msra.mxu0 %v351
    %416 = vmatpush.msra.mxu0 %v350
    %417 = vmatpush.msra.mxu0 %v349
    %418 = vmatpush.msra.mxu0 %v348
    %419 = vmatpush.msra.mxu0 %v347
    %420 = vmatpush.msra.mxu0 %v346
    %421 = vmatpush.msra.mxu0 %v345
    %422 = vmatpush.msra.mxu0 %v344
    %423 = vmatpush.msra.mxu0 %v343
    %424 = vmatpush.msra.mxu0 %v342
    %425 = vmatpush.msra.mxu0 %v341
    %426 = vmatpush.msra.mxu0 %v340
    %427 = vmatpush.msra.mxu0 %v339
    %428 = vmatpush.msra.mxu0 %v338
    %429 = vmatpush.msra.mxu0 %v337
    %430 = vmatpush.msra.mxu0 %v336
    %431 = vmatmul.f32.gmra.mxu0 %v330
    %v432 = vpop.f32.mrf.mxu0
    %v433 = vadd.f32 %v407, %v432
    %434 = vmatmul.f32.gmra.mxu0 %v335
    %v435 = vpop.f32.mrf.mxu0
    %v436 = vadd.f32 %v410, %v435
    %437 = vmatmul.f32.gmra.mxu0 %v325
    %v438 = vpop.f32.mrf.mxu0
    %v439 = vadd.f32 %v413, %v438
    %440 = vdwg.mxu0
    %v441 = vrot.slane %v293, 4
    %v442 = vsel %vm332, %v441, %v317
    %v444 = vrot.slane %v294, 6
    %v446 = vrot.slane %v309, 3
    %v447 = vsel %vm354, %v446, %v325
    %v449 = vrot.slane %v310, 5
    %v451 = vsel %vm327, %v314, %v442
    %v452 = vsel %vm329, %v451, %v444
    %v453 = vsel %vm164, %v444, %v322
    %v454 = vsel %vm332, %v453, %v447
    %v455 = vsel %vm334, %v454, %v449
    %s456 = scalar_lea.vmem %s3, 256
    %v457 = vld [vmem:[%s456] sm:$0xff]
    %v458 = vld [vmem:[%s456 + $0x8] sm:$0xff]
    %v459 = vld [vmem:[%s456 + $0x10] sm:$0xff]
    %v460 = vld [vmem:[%s456 + $0x18] sm:$0xff]
    %v461 = vld [vmem:[%s456 + $0x20] sm:$0xff]
    %v462 = vld [vmem:[%s456 + $0x28] sm:$0xff]
    %v463 = vld [vmem:[%s456 + $0x30] sm:$0xff]
    %v464 = vld [vmem:[%s456 + $0x38] sm:$0xff]
    %v465 = vld [vmem:[%s456 + $0x40] sm:$0xff]
    %v466 = vld [vmem:[%s456 + $0x48] sm:$0xff]
    %v467 = vld [vmem:[%s456 + $0x50] sm:$0xff]
    %v468 = vld [vmem:[%s456 + $0x58] sm:$0xff]
    %v469 = vld [vmem:[%s456 + $0x60] sm:$0xff]
    %v470 = vld [vmem:[%s456 + $0x68] sm:$0xff]
    %v471 = vld [vmem:[%s456 + $0x70] sm:$0xff]
    %v472 = vld [vmem:[%s456 + $0x78] sm:$0xff]
    %473 = vmatpush.msra.mxu0 %v472
    %474 = vmatpush.msra.mxu0 %v471
    %475 = vmatpush.msra.mxu0 %v470
    %476 = vmatpush.msra.mxu0 %v469
    %477 = vmatpush.msra.mxu0 %v468
    %478 = vmatpush.msra.mxu0 %v467
    %479 = vmatpush.msra.mxu0 %v466
    %480 = vmatpush.msra.mxu0 %v465
    %481 = vmatpush.msra.mxu0 %v464
    %482 = vmatpush.msra.mxu0 %v463
    %483 = vmatpush.msra.mxu0 %v462
    %484 = vmatpush.msra.mxu0 %v461
    %485 = vmatpush.msra.mxu0 %v460
    %486 = vmatpush.msra.mxu0 %v459
    %487 = vmatpush.msra.mxu0 %v458
    %488 = vmatpush.msra.mxu0 %v457
    %489 = vmatmul.f32.gmra.mxu0 %v452
    %v490 = vpop.f32.mrf.mxu0
    %v491 = vadd.f32 0.0, %v490
    %492 = vmatmul.f32.gmra.mxu0 %v455
    %v493 = vpop.f32.mrf.mxu0
    %v494 = vadd.f32 0.0, %v493
    %495 = vmatmul.f32.gmra.mxu0 %v449
    %v496 = vpop.f32.mrf.mxu0
    %v497 = vadd.f32 0.0, %v496
    %498 = vdwg.mxu0
    %v499 = vadd.f32 %v433, %v491
    %v500 = vadd.f32 %v436, %v494
    %v501 = vadd.f32 %v439, %v497
    %v502 = vrot.slane %v293, 5
    %v504 = vrot.slane %v294, 7
    %v507 = vrot.slane %v294, 1
    %v508 = vrot.slane %v295, 1
    %v509 = vsel %vm334, %v507, %v508
    %v512 = vrot.slane %v309, 4
    %v514 = vrot.slane %v310, 6
    %v516 = vsel %vm327, %v502, %v504
    %v517 = vsel %vm329, %v516, %v509
    %v518 = vsel %vm164, %v508, %v512
    %v519 = vsel %vm332, %v518, %v514
    %v520 = vsel %vm334, %v519, %v310
    %s521 = scalar_lea.vmem %s3, 384
    %v522 = vld [vmem:[%s521] sm:$0xff]
    %v523 = vld [vmem:[%s521 + $0x8] sm:$0xff]
    %v524 = vld [vmem:[%s521 + $0x10] sm:$0xff]
    %v525 = vld [vmem:[%s521 + $0x18] sm:$0xff]
    %v526 = vld [vmem:[%s521 + $0x20] sm:$0xff]
    %v527 = vld [vmem:[%s521 + $0x28] sm:$0xff]
    %v528 = vld [vmem:[%s521 + $0x30] sm:$0xff]
    %v529 = vld [vmem:[%s521 + $0x38] sm:$0xff]
    %v530 = vld [vmem:[%s521 + $0x40] sm:$0xff]
    %v531 = vld [vmem:[%s521 + $0x48] sm:$0xff]
    %v532 = vld [vmem:[%s521 + $0x50] sm:$0xff]
    %v533 = vld [vmem:[%s521 + $0x58] sm:$0xff]
    %v534 = vld [vmem:[%s521 + $0x60] sm:$0xff]
    %v535 = vld [vmem:[%s521 + $0x68] sm:$0xff]
    %v536 = vld [vmem:[%s521 + $0x70] sm:$0xff]
    %v537 = vld [vmem:[%s521 + $0x78] sm:$0xff]
    %538 = vmatpush.msra.mxu0 %v537
    %539 = vmatpush.msra.mxu0 %v536
    %540 = vmatpush.msra.mxu0 %v535
    %541 = vmatpush.msra.mxu0 %v534
    %542 = vmatpush.msra.mxu0 %v533
    %543 = vmatpush.msra.mxu0 %v532
    %544 = vmatpush.msra.mxu0 %v531
    %545 = vmatpush.msra.mxu0 %v530
    %546 = vmatpush.msra.mxu0 %v529
    %547 = vmatpush.msra.mxu0 %v528
    %548 = vmatpush.msra.mxu0 %v527
    %549 = vmatpush.msra.mxu0 %v526
    %550 = vmatpush.msra.mxu0 %v525
    %551 = vmatpush.msra.mxu0 %v524
    %552 = vmatpush.msra.mxu0 %v523
    %553 = vmatpush.msra.mxu0 %v522
    %554 = vmatmul.f32.gmra.mxu0 %v517
    %v555 = vpop.f32.mrf.mxu0
    %v556 = vadd.f32 0.0, %v555
    %557 = vmatmul.f32.gmra.mxu0 %v520
    %v558 = vpop.f32.mrf.mxu0
    %v559 = vadd.f32 0.0, %v558
    %560 = vmatmul.f32.gmra.mxu0 %v311
    %v561 = vpop.f32.mrf.mxu0
    %v562 = vadd.f32 0.0, %v561
    %563 = vdwg.mxu0
    %v564 = vadd.f32 %v499, %v556
    %v565 = vadd.f32 %v500, %v559
    %v566 = vadd.f32 %v501, %v562
    %vm567 = vcmask 1041408
    %v568 = vrot.slane %v293, 6
    %v569 = vsel %vm567, %v568, %v444
    %v571 = vrot.slane %v295, 2
    %v573 = vrot.slane %v309, 5
    %v574 = vsel %vm327, %v573, %v449
    %v576 = vrot.slane %v310, 7
    %v579 = vrot.slane %v311, 1
    %v581 = vsel %vm327, %v569, %v294
    %v582 = vsel %vm329, %v581, %v571
    %v583 = vsel %vm164, %v571, %v574
    %v584 = vsel %vm332, %v583, %v576
    %v585 = vsel %vm334, %v584, %v579
    %s586 = scalar_lea.vmem %s3, 512
    %v587 = vld [vmem:[%s586] sm:$0xff]
    %v588 = vld [vmem:[%s586 + $0x8] sm:$0xff]
    %v589 = vld [vmem:[%s586 + $0x10] sm:$0xff]
    %v590 = vld [vmem:[%s586 + $0x18] sm:$0xff]
    %v591 = vld [vmem:[%s586 + $0x20] sm:$0xff]
    %v592 = vld [vmem:[%s586 + $0x28] sm:$0xff]
    %v593 = vld [vmem:[%s586 + $0x30] sm:$0xff]
    %v594 = vld [vmem:[%s586 + $0x38] sm:$0xff]
    %v595 = vld [vmem:[%s586 + $0x40] sm:$0xff]
    %v596 = vld [vmem:[%s586 + $0x48] sm:$0xff]
    %v597 = vld [vmem:[%s586 + $0x50] sm:$0xff]
    %v598 = vld [vmem:[%s586 + $0x58] sm:$0xff]
    %v599 = vld [vmem:[%s586 + $0x60] sm:$0xff]
    %v600 = vld [vmem:[%s586 + $0x68] sm:$0xff]
    %v601 = vld [vmem:[%s586 + $0x70] sm:$0xff]
    %v602 = vld [vmem:[%s586 + $0x78] sm:$0xff]
    %603 = vmatpush.msra.mxu0 %v602
    %604 = vmatpush.msra.mxu0 %v601
    %605 = vmatpush.msra.mxu0 %v600
    %606 = vmatpush.msra.mxu0 %v599
    %607 = vmatpush.msra.mxu0 %v598
    %608 = vmatpush.msra.mxu0 %v597
    %609 = vmatpush.msra.mxu0 %v596
    %610 = vmatpush.msra.mxu0 %v595
    %611 = vmatpush.msra.mxu0 %v594
    %612 = vmatpush.msra.mxu0 %v593
    %613 = vmatpush.msra.mxu0 %v592
    %614 = vmatpush.msra.mxu0 %v591
    %615 = vmatpush.msra.mxu0 %v590
    %616 = vmatpush.msra.mxu0 %v589
    %617 = vmatpush.msra.mxu0 %v588
    %618 = vmatpush.msra.mxu0 %v587
    %619 = vmatmul.f32.gmra.mxu0 %v582
    %v620 = vpop.f32.mrf.mxu0
    %v621 = vadd.f32 0.0, %v620
    %622 = vmatmul.f32.gmra.mxu0 %v585
    %v623 = vpop.f32.mrf.mxu0
    %v624 = vadd.f32 0.0, %v623
    %625 = vmatmul.f32.gmra.mxu0 %v579
    %v626 = vpop.f32.mrf.mxu0
    %v627 = vadd.f32 0.0, %v626
    %628 = vdwg.mxu0
    %v629 = vadd.f32 %v564, %v621
    %v630 = vadd.f32 %v565, %v624
    %v631 = vadd.f32 %v566, %v627
    %v632 = vrot.slane %v293, 7
    %v633 = vsel %vm164, %v632, %v504
    %v636 = vrot.slane %v295, 3
    %v638 = vrot.slane %v309, 6
    %v639 = vsel %vm567, %v638, %v514
    %v641 = vrot.slane %v311, 2
    %v643 = vsel %vm327, %v633, %v507
    %v644 = vsel %vm329, %v643, %v636
    %v645 = vsel %vm164, %v636, %v639
    %v646 = vsel %vm332, %v645, %v310
    %v647 = vsel %vm334, %v646, %v641
    %s648 = scalar_lea.vmem %s3, 640
    %v649 = vld [vmem:[%s648] sm:$0xff]
    %v650 = vld [vmem:[%s648 + $0x8] sm:$0xff]
    %v651 = vld [vmem:[%s648 + $0x10] sm:$0xff]
    %v652 = vld [vmem:[%s648 + $0x18] sm:$0xff]
    %v653 = vld [vmem:[%s648 + $0x20] sm:$0xff]
    %v654 = vld [vmem:[%s648 + $0x28] sm:$0xff]
    %v655 = vld [vmem:[%s648 + $0x30] sm:$0xff]
    %v656 = vld [vmem:[%s648 + $0x38] sm:$0xff]
    %v657 = vld [vmem:[%s648 + $0x40] sm:$0xff]
    %v658 = vld [vmem:[%s648 + $0x48] sm:$0xff]
    %v659 = vld [vmem:[%s648 + $0x50] sm:$0xff]
    %v660 = vld [vmem:[%s648 + $0x58] sm:$0xff]
    %v661 = vld [vmem:[%s648 + $0x60] sm:$0xff]
    %v662 = vld [vmem:[%s648 + $0x68] sm:$0xff]
    %v663 = vld [vmem:[%s648 + $0x70] sm:$0xff]
    %v664 = vld [vmem:[%s648 + $0x78] sm:$0xff]
    %665 = vmatpush.msra.mxu0 %v664
    %666 = vmatpush.msra.mxu0 %v663
    %667 = vmatpush.msra.mxu0 %v662
    %668 = vmatpush.msra.mxu0 %v661
    %669 = vmatpush.msra.mxu0 %v660
    %670 = vmatpush.msra.mxu0 %v659
    %671 = vmatpush.msra.mxu0 %v658
    %672 = vmatpush.msra.mxu0 %v657
    %673 = vmatpush.msra.mxu0 %v656
    %674 = vmatpush.msra.mxu0 %v655
    %675 = vmatpush.msra.mxu0 %v654
    %676 = vmatpush.msra.mxu0 %v653
    %677 = vmatpush.msra.mxu0 %v652
    %678 = vmatpush.msra.mxu0 %v651
    %679 = vmatpush.msra.mxu0 %v650
    %680 = vmatpush.msra.mxu0 %v649
    %681 = vmatmul.f32.gmra.mxu0 %v644
    %v682 = vpop.f32.mrf.mxu0
    %v683 = vadd.f32 0.0, %v682
    %684 = vmatmul.f32.gmra.mxu0 %v647
    %v685 = vpop.f32.mrf.mxu0
    %v686 = vadd.f32 0.0, %v685
    %687 = vmatmul.f32.gmra.mxu0 %v641
    %v688 = vpop.f32.mrf.mxu0
    %v689 = vadd.f32 0.0, %v688
    %690 = vdwg.mxu0
    %v691 = vadd.f32 %v629, %v683
    %v692 = vadd.f32 %v630, %v686
    %v693 = vadd.f32 %v631, %v689
    %v694 = vrot.slane %v294, 2
    %v696 = vrot.slane %v295, 4
    %v697 = vsel %vm332, %v317, %v696
    %v699 = vrot.slane %v295, 6
    %v701 = vrot.slane %v310, 1
    %v703 = vrot.slane %v311, 3
    %v704 = vsel %vm354, %v325, %v703
    %v706 = vrot.slane %v311, 5
    %v708 = vsel %vm327, %v694, %v697
    %v709 = vsel %vm329, %v708, %v699
    %v710 = vsel %vm164, %v699, %v701
    %v711 = vsel %vm332, %v710, %v704
    %v712 = vsel %vm334, %v711, %v706
    %s713 = scalar_lea.vmem %s3, 768
    %v714 = vld [vmem:[%s713] sm:$0xff]
    %v715 = vld [vmem:[%s713 + $0x8] sm:$0xff]
    %v716 = vld [vmem:[%s713 + $0x10] sm:$0xff]
    %v717 = vld [vmem:[%s713 + $0x18] sm:$0xff]
    %v718 = vld [vmem:[%s713 + $0x20] sm:$0xff]
    %v719 = vld [vmem:[%s713 + $0x28] sm:$0xff]
    %v720 = vld [vmem:[%s713 + $0x30] sm:$0xff]
    %v721 = vld [vmem:[%s713 + $0x38] sm:$0xff]
    %v722 = vld [vmem:[%s713 + $0x40] sm:$0xff]
    %v723 = vld [vmem:[%s713 + $0x48] sm:$0xff]
    %v724 = vld [vmem:[%s713 + $0x50] sm:$0xff]
    %v725 = vld [vmem:[%s713 + $0x58] sm:$0xff]
    %v726 = vld [vmem:[%s713 + $0x60] sm:$0xff]
    %v727 = vld [vmem:[%s713 + $0x68] sm:$0xff]
    %v728 = vld [vmem:[%s713 + $0x70] sm:$0xff]
    %v729 = vld [vmem:[%s713 + $0x78] sm:$0xff]
    %730 = vmatpush.msra.mxu0 %v729
    %731 = vmatpush.msra.mxu0 %v728
    %732 = vmatpush.msra.mxu0 %v727
    %733 = vmatpush.msra.mxu0 %v726
    %734 = vmatpush.msra.mxu0 %v725
    %735 = vmatpush.msra.mxu0 %v724
    %736 = vmatpush.msra.mxu0 %v723
    %737 = vmatpush.msra.mxu0 %v722
    %738 = vmatpush.msra.mxu0 %v721
    %739 = vmatpush.msra.mxu0 %v720
    %740 = vmatpush.msra.mxu0 %v719
    %741 = vmatpush.msra.mxu0 %v718
    %742 = vmatpush.msra.mxu0 %v717
    %743 = vmatpush.msra.mxu0 %v716
    %744 = vmatpush.msra.mxu0 %v715
    %745 = vmatpush.msra.mxu0 %v714
    %746 = vmatmul.f32.gmra.mxu0 %v709
    %v747 = vpop.f32.mrf.mxu0
    %v748 = vadd.f32 0.0, %v747
    %749 = vmatmul.f32.gmra.mxu0 %v712
    %v750 = vpop.f32.mrf.mxu0
    %v751 = vadd.f32 0.0, %v750
    %752 = vmatmul.f32.gmra.mxu0 %v706
    %v753 = vpop.f32.mrf.mxu0
    %v754 = vadd.f32 0.0, %v753
    %755 = vdwg.mxu0
    %v756 = vadd.f32 %v691, %v748
    %v757 = vadd.f32 %v692, %v751
    %v758 = vadd.f32 %v693, %v754
    %v760 = vrot.slane %v295, 5
    %v762 = vrot.slane %v295, 7
    %v765 = vrot.slane %v311, 4
    %v767 = vrot.slane %v311, 6
    %v769 = vsel %vm327, %v356, %v760
    %v770 = vsel %vm329, %v769, %v762
    %v771 = vsel %vm164, %v762, %v362
    %v772 = vsel %vm332, %v771, %v765
    %v773 = vsel %vm334, %v772, %v767
    %s774 = scalar_lea.vmem %s3, 896
    %v775 = vld [vmem:[%s774] sm:$0xff]
    %v776 = vld [vmem:[%s774 + $0x8] sm:$0xff]
    %v777 = vld [vmem:[%s774 + $0x10] sm:$0xff]
    %v778 = vld [vmem:[%s774 + $0x18] sm:$0xff]
    %v779 = vld [vmem:[%s774 + $0x20] sm:$0xff]
    %v780 = vld [vmem:[%s774 + $0x28] sm:$0xff]
    %v781 = vld [vmem:[%s774 + $0x30] sm:$0xff]
    %v782 = vld [vmem:[%s774 + $0x38] sm:$0xff]
    %v783 = vld [vmem:[%s774 + $0x40] sm:$0xff]
    %v784 = vld [vmem:[%s774 + $0x48] sm:$0xff]
    %v785 = vld [vmem:[%s774 + $0x50] sm:$0xff]
    %v786 = vld [vmem:[%s774 + $0x58] sm:$0xff]
    %v787 = vld [vmem:[%s774 + $0x60] sm:$0xff]
    %v788 = vld [vmem:[%s774 + $0x68] sm:$0xff]
    %v789 = vld [vmem:[%s774 + $0x70] sm:$0xff]
    %v790 = vld [vmem:[%s774 + $0x78] sm:$0xff]
    %791 = vmatpush.msra.mxu0 %v790
    %792 = vmatpush.msra.mxu0 %v789
    %793 = vmatpush.msra.mxu0 %v788
    %794 = vmatpush.msra.mxu0 %v787
    %795 = vmatpush.msra.mxu0 %v786
    %796 = vmatpush.msra.mxu0 %v785
    %797 = vmatpush.msra.mxu0 %v784
    %798 = vmatpush.msra.mxu0 %v783
    %799 = vmatpush.msra.mxu0 %v782
    %800 = vmatpush.msra.mxu0 %v781
    %801 = vmatpush.msra.mxu0 %v780
    %802 = vmatpush.msra.mxu0 %v779
    %803 = vmatpush.msra.mxu0 %v778
    %804 = vmatpush.msra.mxu0 %v777
    %805 = vmatpush.msra.mxu0 %v776
    %806 = vmatpush.msra.mxu0 %v775
    %807 = vmatmul.f32.gmra.mxu0 %v770
    %v808 = vpop.f32.mrf.mxu0
    %v809 = vadd.f32 0.0, %v808
    %810 = vmatmul.f32.gmra.mxu0 %v773
    %v811 = vpop.f32.mrf.mxu0
    %v812 = vadd.f32 0.0, %v811
    %813 = vmatmul.f32.gmra.mxu0 %v767
    %v814 = vpop.f32.mrf.mxu0
    %v815 = vadd.f32 0.0, %v814
    %816 = vdwg.mxu0
    %v817 = vadd.f32 %v756, %v809
    %v818 = vadd.f32 %v757, %v812
    %v819 = vadd.f32 %v758, %v815
    %v821 = vrot.slane %v311, 7
    %v822 = vrot.slane %v312, 7
    %v823 = vsel %vm164, %v821, %v822
    %v826 = vsel %vm327, %v317, %v699
    %v827 = vsel %vm329, %v826, %v295
    %v828 = vsel %vm164, %v296, %v325
    %v829 = vsel %vm332, %v828, %v706
    %v830 = vsel %vm334, %v829, %v821
    %s831 = scalar_lea.vmem %s3, 1024
    %v832 = vld [vmem:[%s831] sm:$0xff]
    %v833 = vld [vmem:[%s831 + $0x8] sm:$0xff]
    %v834 = vld [vmem:[%s831 + $0x10] sm:$0xff]
    %v835 = vld [vmem:[%s831 + $0x18] sm:$0xff]
    %v836 = vld [vmem:[%s831 + $0x20] sm:$0xff]
    %v837 = vld [vmem:[%s831 + $0x28] sm:$0xff]
    %v838 = vld [vmem:[%s831 + $0x30] sm:$0xff]
    %v839 = vld [vmem:[%s831 + $0x38] sm:$0xff]
    %v840 = vld [vmem:[%s831 + $0x40] sm:$0xff]
    %v841 = vld [vmem:[%s831 + $0x48] sm:$0xff]
    %v842 = vld [vmem:[%s831 + $0x50] sm:$0xff]
    %v843 = vld [vmem:[%s831 + $0x58] sm:$0xff]
    %v844 = vld [vmem:[%s831 + $0x60] sm:$0xff]
    %v845 = vld [vmem:[%s831 + $0x68] sm:$0xff]
    %v846 = vld [vmem:[%s831 + $0x70] sm:$0xff]
    %v847 = vld [vmem:[%s831 + $0x78] sm:$0xff]
    %848 = vmatpush.msra.mxu0 %v847
    %849 = vmatpush.msra.mxu0 %v846
    %850 = vmatpush.msra.mxu0 %v845
    %851 = vmatpush.msra.mxu0 %v844
    %852 = vmatpush.msra.mxu0 %v843
    %853 = vmatpush.msra.mxu0 %v842
    %854 = vmatpush.msra.mxu0 %v841
    %855 = vmatpush.msra.mxu0 %v840
    %856 = vmatpush.msra.mxu0 %v839
    %857 = vmatpush.msra.mxu0 %v838
    %858 = vmatpush.msra.mxu0 %v837
    %859 = vmatpush.msra.mxu0 %v836
    %860 = vmatpush.msra.mxu0 %v835
    %861 = vmatpush.msra.mxu0 %v834
    %862 = vmatpush.msra.mxu0 %v833
    %863 = vmatpush.msra.mxu0 %v832
    %864 = vmatmul.f32.gmra.mxu0 %v827
    %v865 = vpop.f32.mrf.mxu0
    %v866 = vadd.f32 0.0, %v865
    %867 = vmatmul.f32.gmra.mxu0 %v830
    %v868 = vpop.f32.mrf.mxu0
    %v869 = vadd.f32 0.0, %v868
    %870 = vmatmul.f32.gmra.mxu0 %v823
    %v871 = vpop.f32.mrf.mxu0
    %v872 = vadd.f32 0.0, %v871
    %873 = vdwg.mxu0
    %v874 = vadd.f32 %v817, %v866
    %v875 = vadd.f32 %v818, %v869
    %v876 = vadd.f32 %v819, %v872
    %v877 = vld [vmem:[%s4] sm:$0x1]
    %v879 = vperm.slane %v877, 0
    %v881 = vadd.f32 %v874, %v879
    %v882 = vadd.f32 %v875, %v879
    %v883 = vadd.f32 %v876, %v879
    %v884 = vtanh.pop %v881
    %v885 = vtanh.pop %v882
    %v886 = vtanh.pop %v883
    %v888 = vrot.slane %v884, 1
    %v890 = vrot.slane %v884, 2
    %v892 = vrot.slane %v884, 3
    %v894 = vrot.slane %v884, 4
    %v896 = vrot.slane %v884, 5
    %v898 = vrot.slane %v884, 6
    %v900 = vrot.slane %v884, 7
    %v903 = vrot.slane %v885, 1
    %v905 = vrot.slane %v885, 2
    %v907 = vrot.slane %v885, 3
    %v909 = vrot.slane %v885, 4
    %v911 = vrot.slane %v885, 5
    %v913 = vrot.slane %v885, 6
    %v916 = vrot.slane %v886, 7
    %v918 = vsel %vm164, %v884, %v885
    %v919 = vsel %vm164, %v888, %v903
    %v920 = vsel %vm164, %v890, %v905
    %v921 = vsel %vm164, %v892, %v907
    %v922 = vsel %vm164, %v894, %v909
    %v923 = vsel %vm164, %v896, %v911
    %v924 = vsel %vm164, %v898, %v913
    %v925 = vsel %vm164, %v900, %v916
    %v926 = vsel %vm164, %v885, %v886
    %v927 = vld [vmem:[%s5] sm:$0xff]
    %v928 = vld [vmem:[%s5 + $0x8] sm:$0xff]
    %v929 = vld [vmem:[%s5 + $0x10] sm:$0xff]
    %v930 = vld [vmem:[%s5 + $0x18] sm:$0xff]
    %v931 = vld [vmem:[%s5 + $0x20] sm:$0xff]
    %v932 = vld [vmem:[%s5 + $0x28] sm:$0xff]
    %v933 = vld [vmem:[%s5 + $0x30] sm:$0xff]
    %v934 = vld [vmem:[%s5 + $0x38] sm:$0xff]
    %v935 = vld [vmem:[%s5 + $0x40] sm:$0xff]
    %v936 = vld [vmem:[%s5 + $0x48] sm:$0xff]
    %v937 = vld [vmem:[%s5 + $0x50] sm:$0xff]
    %v938 = vld [vmem:[%s5 + $0x58] sm:$0xff]
    %v939 = vld [vmem:[%s5 + $0x60] sm:$0xff]
    %v940 = vld [vmem:[%s5 + $0x68] sm:$0xff]
    %v941 = vld [vmem:[%s5 + $0x70] sm:$0xff]
    %v942 = vld [vmem:[%s5 + $0x78] sm:$0xff]
    %v943 = vld [vmem:[%s5 + $0x80] sm:$0xff]
    %v944 = vld [vmem:[%s5 + $0x88] sm:$0xff]
    %v945 = vld [vmem:[%s5 + $0x90] sm:$0xff]
    %v946 = vld [vmem:[%s5 + $0x98] sm:$0xff]
    %v947 = vld [vmem:[%s5 + $0xa0] sm:$0xff]
    %v948 = vld [vmem:[%s5 + $0xa8] sm:$0xff]
    %v949 = vld [vmem:[%s5 + $0xb0] sm:$0xff]
    %v950 = vld [vmem:[%s5 + $0xb8] sm:$0xff]
    %v951 = vld [vmem:[%s5 + $0xc0] sm:$0xff]
    %v952 = vld [vmem:[%s5 + $0xc8] sm:$0xff]
    %v953 = vld [vmem:[%s5 + $0xd0] sm:$0xff]
    %v954 = vld [vmem:[%s5 + $0xd8] sm:$0xff]
    %v955 = vld [vmem:[%s5 + $0xe0] sm:$0xff]
    %v956 = vld [vmem:[%s5 + $0xe8] sm:$0xff]
    %v957 = vld [vmem:[%s5 + $0xf0] sm:$0xff]
    %v958 = vld [vmem:[%s5 + $0xf8] sm:$0xff]
    %v959 = vld [vmem:[%s5 + $0x100] sm:$0xff]
    %v960 = vld [vmem:[%s5 + $0x108] sm:$0xff]
    %v961 = vld [vmem:[%s5 + $0x110] sm:$0xff]
    %v962 = vld [vmem:[%s5 + $0x118] sm:$0xff]
    %v963 = vld [vmem:[%s5 + $0x120] sm:$0xff]
    %v964 = vld [vmem:[%s5 + $0x128] sm:$0xff]
    %v965 = vld [vmem:[%s5 + $0x130] sm:$0xff]
    %v966 = vld [vmem:[%s5 + $0x138] sm:$0xff]
    %v967 = vld [vmem:[%s5 + $0x140] sm:$0xff]
    %v968 = vld [vmem:[%s5 + $0x148] sm:$0xff]
    %v969 = vld [vmem:[%s5 + $0x150] sm:$0xff]
    %v970 = vld [vmem:[%s5 + $0x158] sm:$0xff]
    %v971 = vld [vmem:[%s5 + $0x160] sm:$0xff]
    %v972 = vld [vmem:[%s5 + $0x168] sm:$0xff]
    %v973 = vld [vmem:[%s5 + $0x170] sm:$0xff]
    %v974 = vld [vmem:[%s5 + $0x178] sm:$0xff]
    %v975 = vld [vmem:[%s5 + $0x180] sm:$0xff]
    %v976 = vld [vmem:[%s5 + $0x188] sm:$0xff]
    %v977 = vld [vmem:[%s5 + $0x190] sm:$0xff]
    %v978 = vld [vmem:[%s5 + $0x198] sm:$0xff]
    %v979 = vld [vmem:[%s5 + $0x1a0] sm:$0xff]
    %v980 = vld [vmem:[%s5 + $0x1a8] sm:$0xff]
    %v981 = vld [vmem:[%s5 + $0x1b0] sm:$0xff]
    %v982 = vld [vmem:[%s5 + $0x1b8] sm:$0xff]
    %v983 = vld [vmem:[%s5 + $0x1c0] sm:$0xff]
    %v984 = vld [vmem:[%s5 + $0x1c8] sm:$0xff]
    %v985 = vld [vmem:[%s5 + $0x1d0] sm:$0xff]
    %v986 = vld [vmem:[%s5 + $0x1d8] sm:$0xff]
    %v987 = vld [vmem:[%s5 + $0x1e0] sm:$0xff]
    %v988 = vld [vmem:[%s5 + $0x1e8] sm:$0xff]
    %v989 = vld [vmem:[%s5 + $0x1f0] sm:$0xff]
    %v990 = vld [vmem:[%s5 + $0x1f8] sm:$0xff]
    %v991 = vld [vmem:[%s5 + $0x200] sm:$0xff]
    %v992 = vld [vmem:[%s5 + $0x208] sm:$0xff]
    %v993 = vld [vmem:[%s5 + $0x210] sm:$0xff]
    %v994 = vld [vmem:[%s5 + $0x218] sm:$0xff]
    %v995 = vld [vmem:[%s5 + $0x220] sm:$0xff]
    %v996 = vld [vmem:[%s5 + $0x228] sm:$0xff]
    %v997 = vld [vmem:[%s5 + $0x230] sm:$0xff]
    %v998 = vld [vmem:[%s5 + $0x238] sm:$0xff]
    %v999 = vld [vmem:[%s5 + $0x240] sm:$0xff]
    %v1000 = vld [vmem:[%s5 + $0x248] sm:$0xff]
    %v1001 = vld [vmem:[%s5 + $0x250] sm:$0xff]
    %v1002 = vld [vmem:[%s5 + $0x258] sm:$0xff]
    %v1003 = vld [vmem:[%s5 + $0x260] sm:$0xff]
    %v1004 = vld [vmem:[%s5 + $0x268] sm:$0xff]
    %v1005 = vld [vmem:[%s5 + $0x270] sm:$0xff]
    %v1006 = vld [vmem:[%s5 + $0x278] sm:$0xff]
    %v1007 = vld [vmem:[%s5 + $0x280] sm:$0xff]
    %v1008 = vld [vmem:[%s5 + $0x288] sm:$0xff]
    %v1009 = vld [vmem:[%s5 + $0x290] sm:$0xff]
    %v1010 = vld [vmem:[%s5 + $0x298] sm:$0xff]
    %v1011 = vld [vmem:[%s5 + $0x2a0] sm:$0xff]
    %v1012 = vld [vmem:[%s5 + $0x2a8] sm:$0xff]
    %v1013 = vld [vmem:[%s5 + $0x2b0] sm:$0xff]
    %v1014 = vld [vmem:[%s5 + $0x2b8] sm:$0xff]
    %v1015 = vld [vmem:[%s5 + $0x2c0] sm:$0xff]
    %v1016 = vld [vmem:[%s5 + $0x2c8] sm:$0xff]
    %v1017 = vld [vmem:[%s5 + $0x2d0] sm:$0xff]
    %v1018 = vld [vmem:[%s5 + $0x2d8] sm:$0xff]
    %v1019 = vld [vmem:[%s5 + $0x2e0] sm:$0xff]
    %v1020 = vld [vmem:[%s5 + $0x2e8] sm:$0xff]
    %v1021 = vld [vmem:[%s5 + $0x2f0] sm:$0xff]
    %v1022 = vld [vmem:[%s5 + $0x2f8] sm:$0xff]
    %v1023 = vld [vmem:[%s5 + $0x300] sm:$0xff]
    %v1024 = vld [vmem:[%s5 + $0x308] sm:$0xff]
    %v1025 = vld [vmem:[%s5 + $0x310] sm:$0xff]
    %v1026 = vld [vmem:[%s5 + $0x318] sm:$0xff]
    %v1027 = vld [vmem:[%s5 + $0x320] sm:$0xff]
    %v1028 = vld [vmem:[%s5 + $0x328] sm:$0xff]
    %v1029 = vld [vmem:[%s5 + $0x330] sm:$0xff]
    %v1030 = vld [vmem:[%s5 + $0x338] sm:$0xff]
    %v1031 = vld [vmem:[%s5 + $0x340] sm:$0xff]
    %v1032 = vld [vmem:[%s5 + $0x348] sm:$0xff]
    %v1033 = vld [vmem:[%s5 + $0x350] sm:$0xff]
    %v1034 = vld [vmem:[%s5 + $0x358] sm:$0xff]
    %v1035 = vld [vmem:[%s5 + $0x360] sm:$0xff]
    %v1036 = vld [vmem:[%s5 + $0x368] sm:$0xff]
    %v1037 = vld [vmem:[%s5 + $0x370] sm:$0xff]
    %v1038 = vld [vmem:[%s5 + $0x378] sm:$0xff]
    %v1039 = vld [vmem:[%s5 + $0x380] sm:$0xff]
    %v1040 = vld [vmem:[%s5 + $0x388] sm:$0xff]
    %v1041 = vld [vmem:[%s5 + $0x390] sm:$0xff]
    %v1042 = vld [vmem:[%s5 + $0x398] sm:$0xff]
    %v1043 = vld [vmem:[%s5 + $0x3a0] sm:$0xff]
    %v1044 = vld [vmem:[%s5 + $0x3a8] sm:$0xff]
    %v1045 = vld [vmem:[%s5 + $0x3b0] sm:$0xff]
    %v1046 = vld [vmem:[%s5 + $0x3b8] sm:$0xff]
    %v1047 = vld [vmem:[%s5 + $0x3c0] sm:$0xff]
    %v1048 = vld [vmem:[%s5 + $0x3c8] sm:$0xff]
    %v1049 = vld [vmem:[%s5 + $0x3d0] sm:$0xff]
    %v1050 = vld [vmem:[%s5 + $0x3d8] sm:$0xff]
    %v1051 = vld [vmem:[%s5 + $0x3e0] sm:$0xff]
    %v1052 = vld [vmem:[%s5 + $0x3e8] sm:$0xff]
    %v1053 = vld [vmem:[%s5 + $0x3f0] sm:$0xff]
    %v1054 = vld [vmem:[%s5 + $0x3f8] sm:$0xff]
    %v1055 = vld [vmem:[%s5 + $0x400] sm:$0xff]
    %v1056 = vld [vmem:[%s5 + $0x408] sm:$0xff]
    %v1057 = vld [vmem:[%s5 + $0x410] sm:$0xff]
    %v1058 = vld [vmem:[%s5 + $0x418] sm:$0xff]
    %v1059 = vld [vmem:[%s5 + $0x420] sm:$0xff]
    %v1060 = vld [vmem:[%s5 + $0x428] sm:$0xff]
    %v1061 = vld [vmem:[%s5 + $0x430] sm:$0xff]
    %v1062 = vld [vmem:[%s5 + $0x438] sm:$0xff]
    %v1063 = vld [vmem:[%s5 + $0x440] sm:$0xff]
    %v1064 = vld [vmem:[%s5 + $0x448] sm:$0xff]
    %v1065 = vld [vmem:[%s5 + $0x450] sm:$0xff]
    %v1066 = vld [vmem:[%s5 + $0x458] sm:$0xff]
    %v1067 = vld [vmem:[%s5 + $0x460] sm:$0xff]
    %v1068 = vld [vmem:[%s5 + $0x468] sm:$0xff]
    %v1069 = vld [vmem:[%s5 + $0x470] sm:$0xff]
    %v1070 = vld [vmem:[%s5 + $0x478] sm:$0xff]
    %v1071 = vld [vmem:[%s6] sm:$0x1]
    %v1073 = vperm.slane %v1071, 0
    %1075 = vmatpush.msra.mxu0 %v942
    %1076 = vmatpush.msra.mxu0 %v941
    %1077 = vmatpush.msra.mxu0 %v940
    %1078 = vmatpush.msra.mxu0 %v939
    %1079 = vmatpush.msra.mxu0 %v938
    %1080 = vmatpush.msra.mxu0 %v937
    %1081 = vmatpush.msra.mxu0 %v936
    %1082 = vmatpush.msra.mxu0 %v935
    %1083 = vmatpush.msra.mxu0 %v934
    %1084 = vmatpush.msra.mxu0 %v933
    %1085 = vmatpush.msra.mxu0 %v932
    %1086 = vmatpush.msra.mxu0 %v931
    %1087 = vmatpush.msra.mxu0 %v930
    %1088 = vmatpush.msra.mxu0 %v929
    %1089 = vmatpush.msra.mxu0 %v928
    %1090 = vmatpush.msra.mxu0 %v927
    %1091 = vmatmul.f32.gmra.mxu0 %v918
    %v1092 = vpop.f32.mrf.mxu0
    %v1093 = vadd.f32 %v1073, %v1092
    %1094 = vdwg.mxu0
    %1095 = vmatpush.msra.mxu0 %v958
    %1096 = vmatpush.msra.mxu0 %v957
    %1097 = vmatpush.msra.mxu0 %v956
    %1098 = vmatpush.msra.mxu0 %v955
    %1099 = vmatpush.msra.mxu0 %v954
    %1100 = vmatpush.msra.mxu0 %v953
    %1101 = vmatpush.msra.mxu0 %v952
    %1102 = vmatpush.msra.mxu0 %v951
    %1103 = vmatpush.msra.mxu0 %v950
    %1104 = vmatpush.msra.mxu0 %v949
    %1105 = vmatpush.msra.mxu0 %v948
    %1106 = vmatpush.msra.mxu0 %v947
    %1107 = vmatpush.msra.mxu0 %v946
    %1108 = vmatpush.msra.mxu0 %v945
    %1109 = vmatpush.msra.mxu0 %v944
    %1110 = vmatpush.msra.mxu0 %v943
    %1111 = vmatmul.f32.gmra.mxu0 %v919
    %v1112 = vpop.f32.mrf.mxu0
    %v1113 = vadd.f32 %v1093, %v1112
    %1114 = vdwg.mxu0
    %1115 = vmatpush.msra.mxu0 %v974
    %1116 = vmatpush.msra.mxu0 %v973
    %1117 = vmatpush.msra.mxu0 %v972
    %1118 = vmatpush.msra.mxu0 %v971
    %1119 = vmatpush.msra.mxu0 %v970
    %1120 = vmatpush.msra.mxu0 %v969
    %1121 = vmatpush.msra.mxu0 %v968
    %1122 = vmatpush.msra.mxu0 %v967
    %1123 = vmatpush.msra.mxu0 %v966
    %1124 = vmatpush.msra.mxu0 %v965
    %1125 = vmatpush.msra.mxu0 %v964
    %1126 = vmatpush.msra.mxu0 %v963
    %1127 = vmatpush.msra.mxu0 %v962
    %1128 = vmatpush.msra.mxu0 %v961
    %1129 = vmatpush.msra.mxu0 %v960
    %1130 = vmatpush.msra.mxu0 %v959
    %1131 = vmatmul.f32.gmra.mxu0 %v920
    %v1132 = vpop.f32.mrf.mxu0
    %v1133 = vadd.f32 %v1113, %v1132
    %1134 = vdwg.mxu0
    %1135 = vmatpush.msra.mxu0 %v990
    %1136 = vmatpush.msra.mxu0 %v989
    %1137 = vmatpush.msra.mxu0 %v988
    %1138 = vmatpush.msra.mxu0 %v987
    %1139 = vmatpush.msra.mxu0 %v986
    %1140 = vmatpush.msra.mxu0 %v985
    %1141 = vmatpush.msra.mxu0 %v984
    %1142 = vmatpush.msra.mxu0 %v983
    %1143 = vmatpush.msra.mxu0 %v982
    %1144 = vmatpush.msra.mxu0 %v981
    %1145 = vmatpush.msra.mxu0 %v980
    %1146 = vmatpush.msra.mxu0 %v979
    %1147 = vmatpush.msra.mxu0 %v978
    %1148 = vmatpush.msra.mxu0 %v977
    %1149 = vmatpush.msra.mxu0 %v976
    %1150 = vmatpush.msra.mxu0 %v975
    %1151 = vmatmul.f32.gmra.mxu0 %v921
    %v1152 = vpop.f32.mrf.mxu0
    %v1153 = vadd.f32 %v1133, %v1152
    %1154 = vdwg.mxu0
    %1155 = vmatpush.msra.mxu0 %v1006
    %1156 = vmatpush.msra.mxu0 %v1005
    %1157 = vmatpush.msra.mxu0 %v1004
    %1158 = vmatpush.msra.mxu0 %v1003
    %1159 = vmatpush.msra.mxu0 %v1002
    %1160 = vmatpush.msra.mxu0 %v1001
    %1161 = vmatpush.msra.mxu0 %v1000
    %1162 = vmatpush.msra.mxu0 %v999
    %1163 = vmatpush.msra.mxu0 %v998
    %1164 = vmatpush.msra.mxu0 %v997
    %1165 = vmatpush.msra.mxu0 %v996
    %1166 = vmatpush.msra.mxu0 %v995
    %1167 = vmatpush.msra.mxu0 %v994
    %1168 = vmatpush.msra.mxu0 %v993
    %1169 = vmatpush.msra.mxu0 %v992
    %1170 = vmatpush.msra.mxu0 %v991
    %1171 = vmatmul.f32.gmra.mxu0 %v922
    %v1172 = vpop.f32.mrf.mxu0
    %v1173 = vadd.f32 %v1153, %v1172
    %1174 = vdwg.mxu0
    %1175 = vmatpush.msra.mxu0 %v1022
    %1176 = vmatpush.msra.mxu0 %v1021
    %1177 = vmatpush.msra.mxu0 %v1020
    %1178 = vmatpush.msra.mxu0 %v1019
    %1179 = vmatpush.msra.mxu0 %v1018
    %1180 = vmatpush.msra.mxu0 %v1017
    %1181 = vmatpush.msra.mxu0 %v1016
    %1182 = vmatpush.msra.mxu0 %v1015
    %1183 = vmatpush.msra.mxu0 %v1014
    %1184 = vmatpush.msra.mxu0 %v1013
    %1185 = vmatpush.msra.mxu0 %v1012
    %1186 = vmatpush.msra.mxu0 %v1011
    %1187 = vmatpush.msra.mxu0 %v1010
    %1188 = vmatpush.msra.mxu0 %v1009
    %1189 = vmatpush.msra.mxu0 %v1008
    %1190 = vmatpush.msra.mxu0 %v1007
    %1191 = vmatmul.f32.gmra.mxu0 %v923
    %v1192 = vpop.f32.mrf.mxu0
    %v1193 = vadd.f32 %v1173, %v1192
    %1194 = vdwg.mxu0
    %1195 = vmatpush.msra.mxu0 %v1038
    %1196 = vmatpush.msra.mxu0 %v1037
    %1197 = vmatpush.msra.mxu0 %v1036
    %1198 = vmatpush.msra.mxu0 %v1035
    %1199 = vmatpush.msra.mxu0 %v1034
    %1200 = vmatpush.msra.mxu0 %v1033
    %1201 = vmatpush.msra.mxu0 %v1032
    %1202 = vmatpush.msra.mxu0 %v1031
    %1203 = vmatpush.msra.mxu0 %v1030
    %1204 = vmatpush.msra.mxu0 %v1029
    %1205 = vmatpush.msra.mxu0 %v1028
    %1206 = vmatpush.msra.mxu0 %v1027
    %1207 = vmatpush.msra.mxu0 %v1026
    %1208 = vmatpush.msra.mxu0 %v1025
    %1209 = vmatpush.msra.mxu0 %v1024
    %1210 = vmatpush.msra.mxu0 %v1023
    %1211 = vmatmul.f32.gmra.mxu0 %v924
    %v1212 = vpop.f32.mrf.mxu0
    %v1213 = vadd.f32 %v1193, %v1212
    %1214 = vdwg.mxu0
    %1215 = vmatpush.msra.mxu0 %v1054
    %1216 = vmatpush.msra.mxu0 %v1053
    %1217 = vmatpush.msra.mxu0 %v1052
    %1218 = vmatpush.msra.mxu0 %v1051
    %1219 = vmatpush.msra.mxu0 %v1050
    %1220 = vmatpush.msra.mxu0 %v1049
    %1221 = vmatpush.msra.mxu0 %v1048
    %1222 = vmatpush.msra.mxu0 %v1047
    %1223 = vmatpush.msra.mxu0 %v1046
    %1224 = vmatpush.msra.mxu0 %v1045
    %1225 = vmatpush.msra.mxu0 %v1044
    %1226 = vmatpush.msra.mxu0 %v1043
    %1227 = vmatpush.msra.mxu0 %v1042
    %1228 = vmatpush.msra.mxu0 %v1041
    %1229 = vmatpush.msra.mxu0 %v1040
    %1230 = vmatpush.msra.mxu0 %v1039
    %1231 = vmatmul.f32.gmra.mxu0 %v925
    %v1232 = vpop.f32.mrf.mxu0
    %v1233 = vadd.f32 %v1213, %v1232
    %1234 = vdwg.mxu0
    %1235 = vmatpush.msra.mxu0 %v1070
    %1236 = vmatpush.msra.mxu0 %v1069
    %1237 = vmatpush.msra.mxu0 %v1068
    %1238 = vmatpush.msra.mxu0 %v1067
    %1239 = vmatpush.msra.mxu0 %v1066
    %1240 = vmatpush.msra.mxu0 %v1065
    %1241 = vmatpush.msra.mxu0 %v1064
    %1242 = vmatpush.msra.mxu0 %v1063
    %1243 = vmatpush.msra.mxu0 %v1062
    %1244 = vmatpush.msra.mxu0 %v1061
    %1245 = vmatpush.msra.mxu0 %v1060
    %1246 = vmatpush.msra.mxu0 %v1059
    %1247 = vmatpush.msra.mxu0 %v1058
    %1248 = vmatpush.msra.mxu0 %v1057
    %1249 = vmatpush.msra.mxu0 %v1056
    %1250 = vmatpush.msra.mxu0 %v1055
    %1251 = vmatmul.f32.gmra.mxu0 %v926
    %v1252 = vpop.f32.mrf.mxu0
    %v1253 = vadd.f32 %v1233, %v1252
    %1254 = vdwg.mxu0
    %v1255 = vtanh.pop %v1253
    %vm1256 = vcmask 74752
    %1257 = vst.msk [vmem:[#allocation2] sm:$0x3] %vm1256, %v1255
    // Predicated region
    $region30: #{classifier_forward.1} parent=1 // pred_check
      _
    $region31: #{classifier_forward.1} parent=1 // pred_check_branch
      %1259 = sbr.rel (0) target = $region33
    $region32: #{classifier_forward.1} parent=1 // pred_region
      %1261 = vsyncadd [#allocation3], 0
      %s1263 = sshll.u32 [#allocation2], 4
      %s1264 = int_to_ptr.vmem [resolvable:$true] %s1263
      %s1265 = sshll.u32 %s7, 4
      %s1266 = int_to_ptr.hbm [resolvable:$true] %s1265
      %1268 = dma.vmem_to_hbm [thread:$0]  %s1264, 32, %s1266, [#allocation3]
    $region33: #{classifier_forward.1} parent=1 // pred_fallthru
      _
    // Predicated region
    $region34: #{classifier_forward.1} parent=1 // pred_check
      _
    $region35: #{classifier_forward.1} parent=1 // pred_check_branch
      %1270 = sbr.rel (0) target = $region37
    $region36: #{classifier_forward.1} parent=1 // pred_region
      %1272 = dma.done [#allocation3], 32
    $region37: #{classifier_forward.1} parent=1 // pred_fallthru
      _
    %1273 = vsyncpa [#allocation3], 1

</llo_original>
